<compile_context>
chip_gen: v7x
topology: tpu7x:2x2x1
jax: 0.10.0
libtpu: 0.0.40
codegen_flags: <defaults>
</compile_context>

<pallas_src>
import jax
import jax.numpy as jnp
from jax.experimental import pallas as pl
from jax.experimental.pallas import tpu as pltpu

IN_FEATURES = 32 * 32 * 3                  # 3072 (already a multiple of 128)
H1, H2, OUT = 120, 84, 10                  # logical layer widths (torch module)
H1_PAD, H2_PAD, OUT_PAD = 128, 128, 128    # lane-dense padded widths
MAX_TILE_B = 512                           # rows per grid step (multiple of 16)


def boringnet_kernel(x_ref, w1_ref, b1_ref, w2_ref, b2_ref, w3_ref, b3_ref,
                     o_ref):
    # x tile: (TILE_B, 3072) f32 -> cast to bf16 for the MXU in-kernel
    # weights: bf16, lane-padded; biases: f32; output tile: (TILE_B, 128) f32.
    x = x_ref[...].astype(jnp.bfloat16)

    # Layer 1: bf16 MXU matmul, f32 accumulate, f32 bias + ReLU on the VPU.
    h1 = jnp.dot(x, w1_ref[...], preferred_element_type=jnp.float32)
    h1 = jnp.maximum(h1 + b1_ref[...], 0.0)

    # Layer 2.
    h2 = jnp.dot(h1.astype(jnp.bfloat16), w2_ref[...],
                 preferred_element_type=jnp.float32)
    h2 = jnp.maximum(h2 + b2_ref[...], 0.0)

    # Layer 3 (final ReLU is intentional: torch forward does F.relu(lin3(x))).
    h3 = jnp.dot(h2.astype(jnp.bfloat16), w3_ref[...],
                 preferred_element_type=jnp.float32)
    h3 = jnp.maximum(h3 + b3_ref[...], 0.0)

    o_ref[...] = h3.astype(o_ref.dtype)


def _pad_to(a, shape):
    return jnp.pad(a, [(0, t - s) for s, t in zip(a.shape, shape)])


@jax.jit
def boringnet_forward(x, params):
    """x: (B, 3, 32, 32) float32 (NCHW). Returns (B, 10) float32."""
    w1, b1, w2, b2, w3, b3 = params
    B = x.shape[0]
    x_flat = x.reshape(B, IN_FEATURES)      # same flattening order as torch .view

    # Batch tiling: round up to a multiple of 16 (bf16 sublane packing after
    # the in-kernel cast), cap the tile at MAX_TILE_B, pad batch to a multiple
    # of the tile.
    b16 = ((B + 15) // 16) * 16
    tile_b = min(MAX_TILE_B, b16)
    b_pad = ((B + tile_b - 1) // tile_b) * tile_b
    if b_pad != B:
        x_flat = jnp.pad(x_flat, ((0, b_pad - B), (0, 0)))

    # Weights -> bf16 MXU operands (lane-padded with zeros: math is identical).
    w1p = _pad_to(w1, (IN_FEATURES, H1_PAD)).astype(jnp.bfloat16)
    w2p = _pad_to(w2, (H1_PAD, H2_PAD)).astype(jnp.bfloat16)
    w3p = _pad_to(w3, (H2_PAD, OUT_PAD)).astype(jnp.bfloat16)
    b1p = _pad_to(b1, (1, H1_PAD))          # biases stay f32
    b2p = _pad_to(b2, (1, H2_PAD))
    b3p = _pad_to(b3, (1, OUT_PAD))

    grid = (b_pad // tile_b,)
    const = lambda shape: pl.BlockSpec(shape, lambda i: tuple(0 for _ in shape))

    flops = 2 * b_pad * (IN_FEATURES * H1_PAD + H1_PAD * H2_PAD
                         + H2_PAD * OUT_PAD)
    bytes_accessed = (x_flat.size * 4                       # f32 x read
                      + (w1p.size + w2p.size + w3p.size) * 2
                      + (b1p.size + b2p.size + b3p.size) * 4
                      + b_pad * OUT_PAD * 4)                 # f32 out write

    out = pl.pallas_call(
        boringnet_kernel,
        out_shape=jax.ShapeDtypeStruct((b_pad, OUT_PAD), jnp.float32),
        grid_spec=pltpu.PrefetchScalarGridSpec(
            num_scalar_prefetch=0,
            grid=grid,
            in_specs=[
                # x: tiled over the batch axis (pipelined HBM->VMEM DMA).
                pl.BlockSpec((tile_b, IN_FEATURES), lambda i: (i, 0)),
                # weights/biases: constant index_map -> fetched once, VMEM-resident.
                const((IN_FEATURES, H1_PAD)), const((1, H1_PAD)),
                const((H1_PAD, H2_PAD)), const((1, H2_PAD)),
                const((H2_PAD, OUT_PAD)), const((1, OUT_PAD)),
            ],
            out_specs=pl.BlockSpec((tile_b, OUT_PAD), lambda i: (i, 0)),
        ),
        compiler_params=pltpu.CompilerParams(
            dimension_semantics=("parallel",),       # megacore-shardable batch
            vmem_limit_bytes=32 * 1024 * 1024,
        ),
        cost_estimate=pl.CostEstimate(
            flops=flops, transcendentals=0, bytes_accessed=bytes_accessed),
    )(x_flat, w1p, b1p, w2p, b2p, w3p, b3p)

    return out[:B, :OUT]


def init_params(key):
    """Deterministic init mimicking nn.Linear default (U[-1/sqrt(fan_in), +])."""
    def linear(key, fan_in, fan_out):
        kw, kb = jax.random.split(key)
        bound = 1.0 / jnp.sqrt(fan_in)
        # stored as (fan_in, fan_out) so the kernel computes x @ W (== x @ W_t.T)
        w = jax.random.uniform(kw, (fan_in, fan_out), jnp.float32, -bound, bound)
        b = jax.random.uniform(kb, (1, fan_out), jnp.float32, -bound, bound)
        return w, b

    k1, k2, k3 = jax.random.split(key, 3)
    w1, b1 = linear(k1, IN_FEATURES, H1)
    w2, b2 = linear(k2, H1, H2)
    w3, b3 = linear(k3, H2, OUT)
    return (w1, b1, w2, b2, w3, b3)


if __name__ == "__main__":
    key = jax.random.PRNGKey(0)
    kx, kp = jax.random.split(key)

    B = 2
    x = jax.random.normal(kx, (B, 3, 32, 32), dtype=jnp.float32)  # NCHW
    params = init_params(kp)

    out = boringnet_forward(x, params)
    out = jax.block_until_ready(out)

    # sanity: shape/dtype and ReLU non-negativity
    assert out.shape == (B, OUT) and out.dtype == jnp.float32
    assert bool(jnp.all(out >= 0.0))

    # reference check in plain f32 JAX (kernel uses bf16 MXU operands, so use
    # a bf16-appropriate tolerance)
    w1, b1, w2, b2, w3, b3 = params
    xf = x.reshape(B, -1)
    ref = jnp.maximum(xf @ w1 + b1, 0.0)
    ref = jnp.maximum(ref @ w2 + b2, 0.0)
    ref = jnp.maximum(ref @ w3 + b3, 0.0)
    assert bool(jnp.allclose(out, ref, atol=5e-2, rtol=5e-2))

    print("KERNEL_OK")
</pallas_src>

<mosaic_0001>
module attributes {stable_mosaic.version = 11 : i64} {
  func.func @boringnet_kernel(%arg0: i32, %arg1: memref<16x3072xf32, #tpu.memory_space<vmem>>, %arg2: memref<3072x128xbf16, #tpu.memory_space<vmem>>, %arg3: memref<1x128xf32, #tpu.memory_space<vmem>>, %arg4: memref<128x128xbf16, #tpu.memory_space<vmem>>, %arg5: memref<1x128xf32, #tpu.memory_space<vmem>>, %arg6: memref<128x128xbf16, #tpu.memory_space<vmem>>, %arg7: memref<1x128xf32, #tpu.memory_space<vmem>>, %arg8: memref<16x128xf32, #tpu.memory_space<vmem>>) attributes {dimension_semantics = [#tpu.dimension_semantics<parallel>], iteration_bounds = array<i64: 1>, scalar_prefetch = 0 : i64, scratch_operands = 0 : i64, tpu.core_type = #tpu.core_type<tc>, window_params = [{transform_indices = @transform_0, window_bounds = array<i64: 16, 3072>}, {pipeline_mode = #tpu.pipeline_mode<synchronous>, transform_indices = @transform_1, window_bounds = array<i64: 3072, 128>}, {pipeline_mode = #tpu.pipeline_mode<synchronous>, transform_indices = @transform_2, window_bounds = array<i64: 1, 128>}, {pipeline_mode = #tpu.pipeline_mode<synchronous>, transform_indices = @transform_3, window_bounds = array<i64: 128, 128>}, {pipeline_mode = #tpu.pipeline_mode<synchronous>, transform_indices = @transform_4, window_bounds = array<i64: 1, 128>}, {pipeline_mode = #tpu.pipeline_mode<synchronous>, transform_indices = @transform_5, window_bounds = array<i64: 128, 128>}, {pipeline_mode = #tpu.pipeline_mode<synchronous>, transform_indices = @transform_6, window_bounds = array<i64: 1, 128>}, {transform_indices = @transform_7, window_bounds = array<i64: 16, 128>}]} {
    %c0 = arith.constant 0 : index
    %c0_0 = arith.constant 0 : index
    %0 = vector.load %arg1[%c0, %c0_0] : memref<16x3072xf32, #tpu.memory_space<vmem>>, vector<16x3072xf32>
    %1 = arith.truncf %0 : vector<16x3072xf32> to vector<16x3072xbf16>
    %c0_1 = arith.constant 0 : index
    %c0_2 = arith.constant 0 : index
    %2 = vector.load %arg2[%c0_1, %c0_2] : memref<3072x128xbf16, #tpu.memory_space<vmem>>, vector<3072x128xbf16>
    %cst = arith.constant dense<0.000000e+00> : vector<16x128xf32>
    %3 = tpu.matmul %1, %2, %cst {dimension_numbers = #tpu.dot_dimension_numbers<[1], [0], [0], [1], [0, 0, 1, 1], [], []>} : vector<16x3072xbf16>, vector<3072x128xbf16>, vector<16x128xf32> -> vector<16x128xf32>
    %c0_3 = arith.constant 0 : index
    %c0_4 = arith.constant 0 : index
    %4 = vector.load %arg3[%c0_3, %c0_4] : memref<1x128xf32, #tpu.memory_space<vmem>>, vector<1x128xf32>
    %5 = vector.broadcast %4 : vector<1x128xf32> to vector<16x128xf32>
    %6 = arith.addf %3, %5 : vector<16x128xf32>
    %cst_5 = arith.constant 0.000000e+00 : f32
    %7 = vector.broadcast %cst_5 : f32 to vector<16x128xf32>
    %8 = arith.maximumf %6, %7 : vector<16x128xf32>
    %9 = arith.truncf %8 : vector<16x128xf32> to vector<16x128xbf16>
    %c0_6 = arith.constant 0 : index
    %c0_7 = arith.constant 0 : index
    %10 = vector.load %arg4[%c0_6, %c0_7] : memref<128x128xbf16, #tpu.memory_space<vmem>>, vector<128x128xbf16>
    %cst_8 = arith.constant dense<0.000000e+00> : vector<16x128xf32>
    %11 = tpu.matmul %9, %10, %cst_8 {dimension_numbers = #tpu.dot_dimension_numbers<[1], [0], [0], [1], [0, 0, 1, 1], [], []>} : vector<16x128xbf16>, vector<128x128xbf16>, vector<16x128xf32> -> vector<16x128xf32>
    %c0_9 = arith.constant 0 : index
    %c0_10 = arith.constant 0 : index
    %12 = vector.load %arg5[%c0_9, %c0_10] : memref<1x128xf32, #tpu.memory_space<vmem>>, vector<1x128xf32>
    %13 = vector.broadcast %12 : vector<1x128xf32> to vector<16x128xf32>
    %14 = arith.addf %11, %13 : vector<16x128xf32>
    %cst_11 = arith.constant 0.000000e+00 : f32
    %15 = vector.broadcast %cst_11 : f32 to vector<16x128xf32>
    %16 = arith.maximumf %14, %15 : vector<16x128xf32>
    %17 = arith.truncf %16 : vector<16x128xf32> to vector<16x128xbf16>
    %c0_12 = arith.constant 0 : index
    %c0_13 = arith.constant 0 : index
    %18 = vector.load %arg6[%c0_12, %c0_13] : memref<128x128xbf16, #tpu.memory_space<vmem>>, vector<128x128xbf16>
    %cst_14 = arith.constant dense<0.000000e+00> : vector<16x128xf32>
    %19 = tpu.matmul %17, %18, %cst_14 {dimension_numbers = #tpu.dot_dimension_numbers<[1], [0], [0], [1], [0, 0, 1, 1], [], []>} : vector<16x128xbf16>, vector<128x128xbf16>, vector<16x128xf32> -> vector<16x128xf32>
    %c0_15 = arith.constant 0 : index
    %c0_16 = arith.constant 0 : index
    %20 = vector.load %arg7[%c0_15, %c0_16] : memref<1x128xf32, #tpu.memory_space<vmem>>, vector<1x128xf32>
    %21 = vector.broadcast %20 : vector<1x128xf32> to vector<16x128xf32>
    %22 = arith.addf %19, %21 : vector<16x128xf32>
    %cst_17 = arith.constant 0.000000e+00 : f32
    %23 = vector.broadcast %cst_17 : f32 to vector<16x128xf32>
    %24 = arith.maximumf %22, %23 : vector<16x128xf32>
    %c0_18 = arith.constant 0 : index
    %c0_19 = arith.constant 0 : index
    %25 = vector.load %arg8[%c0_18, %c0_19] : memref<16x128xf32, #tpu.memory_space<vmem>>, vector<16x128xf32>
    tpu.vector_store %arg8[%c0_18, %c0_19], %24 {strides = array<i32>} : memref<16x128xf32, #tpu.memory_space<vmem>>, vector<16x128xf32>,
    return
  }
  func.func @transform_0(%arg0: i32) -> (i32, i32) {
    %c0_i32 = arith.constant 0 : i32
    %c0_i32_0 = arith.constant 0 : i32
    return %arg0, %c0_i32 : i32, i32
  }
  func.func @transform_1(%arg0: i32) -> (i32, i32) {
    %c0_i32 = arith.constant 0 : i32
    %c0_i32_0 = arith.constant 0 : i32
    %c0_i32_1 = arith.constant 0 : i32
    return %c0_i32, %c0_i32_0 : i32, i32
  }
  func.func @transform_2(%arg0: i32) -> (i32, i32) {
    %c0_i32 = arith.constant 0 : i32
    %c0_i32_0 = arith.constant 0 : i32
    %c0_i32_1 = arith.constant 0 : i32
    return %c0_i32, %c0_i32_0 : i32, i32
  }
  func.func @transform_3(%arg0: i32) -> (i32, i32) {
    %c0_i32 = arith.constant 0 : i32
    %c0_i32_0 = arith.constant 0 : i32
    %c0_i32_1 = arith.constant 0 : i32
    return %c0_i32, %c0_i32_0 : i32, i32
  }
  func.func @transform_4(%arg0: i32) -> (i32, i32) {
    %c0_i32 = arith.constant 0 : i32
    %c0_i32_0 = arith.constant 0 : i32
    %c0_i32_1 = arith.constant 0 : i32
    return %c0_i32, %c0_i32_0 : i32, i32
  }
  func.func @transform_5(%arg0: i32) -> (i32, i32) {
    %c0_i32 = arith.constant 0 : i32
    %c0_i32_0 = arith.constant 0 : i32
    %c0_i32_1 = arith.constant 0 : i32
    return %c0_i32, %c0_i32_0 : i32, i32
  }
  func.func @transform_6(%arg0: i32) -> (i32, i32) {
    %c0_i32 = arith.constant 0 : i32
    %c0_i32_0 = arith.constant 0 : i32
    %c0_i32_1 = arith.constant 0 : i32
    return %c0_i32, %c0_i32_0 : i32, i32
  }
  func.func @transform_7(%arg0: i32) -> (i32, i32) {
    %c0_i32 = arith.constant 0 : i32
    %c0_i32_0 = arith.constant 0 : i32
    return %arg0, %c0_i32 : i32, i32
  }
}

</mosaic_0001>

<llo_original>
// kernel: boringnet_forward.1
$region0: #{boringnet_forward.1}
  #allocation0 [shape = 'u32[]', space=smem, size = 0x4, offset = 0x4, fixed_abs, tag = 'smem constant byte address 0x4 - core index']
  #allocation1 [shape = 'u32[144,128]{1,0:T(1,128)}', space=vmem, size = 0x12000, scoped, tag = 'internal scratch']
  %s0 = inlined_call_operand.vmem [shape: f32[16,3072], index: 0, kind: input, shape index: {}]
  %s1 = inlined_call_operand.vmem [shape: bf16[3072,128], index: 1, kind: input, shape index: {}]
  %s2 = inlined_call_operand.vmem [shape: f32[1,128], index: 2, kind: input, shape index: {}]
  %s3 = inlined_call_operand.vmem [shape: bf16[128,128], index: 3, kind: input, shape index: {}]
  %s4 = inlined_call_operand.vmem [shape: f32[1,128], index: 4, kind: input, shape index: {}]
  %s5 = inlined_call_operand.vmem [shape: bf16[128,128], index: 5, kind: input, shape index: {}]
  %s6 = inlined_call_operand.vmem [shape: f32[1,128], index: 6, kind: input, shape index: {}]
  %s7 = inlined_call_operand.vmem [shape: f32[16,128], index: 7, kind: output, shape index: {}]
  %s8 = sld [smem:[#allocation0]]
  $region38: #{boringnet_forward.1} parent=0
    _
  %s10 = ssub.s32 1, %s8
  %s11 = scalar_select 0, %s10, %s8
  // Predicated region
  $region2: #{boringnet_forward.1} parent=0 // pred_check
    _
  $region3: #{boringnet_forward.1} parent=0 // pred_check_branch
    %13 = sbr.rel (0) target = $region5
  $region4: #{boringnet_forward.1} parent=0 // pred_region
    _
  $region5: #{boringnet_forward.1} parent=0 // pred_fallthru
    _
  // Predicated region
  $region6: #{boringnet_forward.1} parent=0 // pred_check
    _
  $region7: #{boringnet_forward.1} parent=0 // pred_check_branch
    %15 = sbr.rel (0) target = $region9
  $region8: #{boringnet_forward.1} parent=0 // pred_region
    _
  $region9: #{boringnet_forward.1} parent=0 // pred_fallthru
    _
  // Predicated region
  $region10: #{boringnet_forward.1} parent=0 // pred_check
    _
  $region11: #{boringnet_forward.1} parent=0 // pred_check_branch
    %17 = sbr.rel (0) target = $region13
  $region12: #{boringnet_forward.1} parent=0 // pred_region
    _
  $region13: #{boringnet_forward.1} parent=0 // pred_fallthru
    _
  // Predicated region
  $region14: #{boringnet_forward.1} parent=0 // pred_check
    _
  $region15: #{boringnet_forward.1} parent=0 // pred_check_branch
    %19 = sbr.rel (0) target = $region17
  $region16: #{boringnet_forward.1} parent=0 // pred_region
    _
  $region17: #{boringnet_forward.1} parent=0 // pred_fallthru
    _
  // Predicated region
  $region18: #{boringnet_forward.1} parent=0 // pred_check
    _
  $region19: #{boringnet_forward.1} parent=0 // pred_check_branch
    %21 = sbr.rel (0) target = $region21
  $region20: #{boringnet_forward.1} parent=0 // pred_region
    _
  $region21: #{boringnet_forward.1} parent=0 // pred_fallthru
    _
  // Predicated region
  $region22: #{boringnet_forward.1} parent=0 // pred_check
    _
  $region23: #{boringnet_forward.1} parent=0 // pred_check_branch
    %23 = sbr.rel (0) target = $region25
  $region24: #{boringnet_forward.1} parent=0 // pred_region
    _
  $region25: #{boringnet_forward.1} parent=0 // pred_fallthru
    _
  // Predicated region
  $region26: #{boringnet_forward.1} parent=0 // pred_check
    _
  $region27: #{boringnet_forward.1} parent=0 // pred_check_branch
    %25 = sbr.rel (0) target = $region29
  $region28: #{boringnet_forward.1} parent=0 // pred_region
    _
  $region29: #{boringnet_forward.1} parent=0 // pred_fallthru
    _
  %v27 = vld [vmem:[%s0] sm:$0xff]
  %v28 = vld [vmem:[%s0 + $0x8] sm:$0xff]
  %v29 = vld [vmem:[%s0 + $0x10] sm:$0xff]
  %v30 = vld [vmem:[%s0 + $0x18] sm:$0xff]
  %v31 = vld [vmem:[%s0 + $0x20] sm:$0xff]
  %v32 = vld [vmem:[%s0 + $0x28] sm:$0xff]
  %v33 = vld [vmem:[%s0 + $0x30] sm:$0xff]
  %v34 = vld [vmem:[%s0 + $0x38] sm:$0xff]
  %v35 = vld [vmem:[%s0 + $0x40] sm:$0xff]
  %v36 = vld [vmem:[%s0 + $0x48] sm:$0xff]
  %v37 = vld [vmem:[%s0 + $0x50] sm:$0xff]
  %v38 = vld [vmem:[%s0 + $0x58] sm:$0xff]
  %v39 = vld [vmem:[%s0 + $0x60] sm:$0xff]
  %v40 = vld [vmem:[%s0 + $0x68] sm:$0xff]
  %v41 = vld [vmem:[%s0 + $0x70] sm:$0xff]
  %v42 = vld [vmem:[%s0 + $0x78] sm:$0xff]
  %v43 = vld [vmem:[%s0 + $0x80] sm:$0xff]
  %v44 = vld [vmem:[%s0 + $0x88] sm:$0xff]
  %v45 = vld [vmem:[%s0 + $0x90] sm:$0xff]
  %v46 = vld [vmem:[%s0 + $0x98] sm:$0xff]
  %v47 = vld [vmem:[%s0 + $0xa0] sm:$0xff]
  %v48 = vld [vmem:[%s0 + $0xa8] sm:$0xff]
  %v49 = vld [vmem:[%s0 + $0xb0] sm:$0xff]
  %v50 = vld [vmem:[%s0 + $0xb8] sm:$0xff]
  %v51 = vld [vmem:[%s0 + $0xc0] sm:$0xff]
  %v52 = vld [vmem:[%s0 + $0xc8] sm:$0xff]
  %v53 = vld [vmem:[%s0 + $0xd0] sm:$0xff]
  %v54 = vld [vmem:[%s0 + $0xd8] sm:$0xff]
  %v55 = vld [vmem:[%s0 + $0xe0] sm:$0xff]
  %v56 = vld [vmem:[%s0 + $0xe8] sm:$0xff]
  %v57 = vld [vmem:[%s0 + $0xf0] sm:$0xff]
  %v58 = vld [vmem:[%s0 + $0xf8] sm:$0xff]
  %v59 = vld [vmem:[%s0 + $0x100] sm:$0xff]
  %v60 = vld [vmem:[%s0 + $0x108] sm:$0xff]
  %v61 = vld [vmem:[%s0 + $0x110] sm:$0xff]
  %v62 = vld [vmem:[%s0 + $0x118] sm:$0xff]
  %v63 = vld [vmem:[%s0 + $0x120] sm:$0xff]
  %v64 = vld [vmem:[%s0 + $0x128] sm:$0xff]
  %v65 = vld [vmem:[%s0 + $0x130] sm:$0xff]
  %v66 = vld [vmem:[%s0 + $0x138] sm:$0xff]
  %v67 = vld [vmem:[%s0 + $0x140] sm:$0xff]
  %v68 = vld [vmem:[%s0 + $0x148] sm:$0xff]
  %v69 = vld [vmem:[%s0 + $0x150] sm:$0xff]
  %v70 = vld [vmem:[%s0 + $0x158] sm:$0xff]
  %v71 = vld [vmem:[%s0 + $0x160] sm:$0xff]
  %v72 = vld [vmem:[%s0 + $0x168] sm:$0xff]
  %v73 = vld [vmem:[%s0 + $0x170] sm:$0xff]
  %v74 = vld [vmem:[%s0 + $0x178] sm:$0xff]
  %v75 = vpack.c.bf16 %v51, %v27
  %v76 = vpack.c.bf16 %v52, %v28
  %v77 = vpack.c.bf16 %v53, %v29
  %v78 = vpack.c.bf16 %v54, %v30
  %v79 = vpack.c.bf16 %v55, %v31
  %v80 = vpack.c.bf16 %v56, %v32
  %v81 = vpack.c.bf16 %v57, %v33
  %v82 = vpack.c.bf16 %v58, %v34
  %v83 = vpack.c.bf16 %v59, %v35
  %v84 = vpack.c.bf16 %v60, %v36
  %v85 = vpack.c.bf16 %v61, %v37
  %v86 = vpack.c.bf16 %v62, %v38
  %v87 = vpack.c.bf16 %v63, %v39
  %v88 = vpack.c.bf16 %v64, %v40
  %v89 = vpack.c.bf16 %v65, %v41
  %v90 = vpack.c.bf16 %v66, %v42
  %v91 = vpack.c.bf16 %v67, %v43
  %v92 = vpack.c.bf16 %v68, %v44
  %v93 = vpack.c.bf16 %v69, %v45
  %v94 = vpack.c.bf16 %v70, %v46
  %v95 = vpack.c.bf16 %v71, %v47
  %v96 = vpack.c.bf16 %v72, %v48
  %v97 = vpack.c.bf16 %v73, %v49
  %v98 = vpack.c.bf16 %v74, %v50
  %v99 = vld [vmem:[%s1] sm:$0xf]
  %v100 = vld [vmem:[%s1 + $0x4] sm:$0xf]
  %v101 = vld [vmem:[%s1 + $0x8] sm:$0xf]
  %v102 = vld [vmem:[%s1 + $0xc] sm:$0xf]
  %v103 = vld [vmem:[%s1 + $0x10] sm:$0xf]
  %v104 = vld [vmem:[%s1 + $0x14] sm:$0xf]
  %v105 = vld [vmem:[%s1 + $0x18] sm:$0xf]
  %v106 = vld [vmem:[%s1 + $0x1c] sm:$0xf]
  %v107 = vld [vmem:[%s1 + $0x20] sm:$0xf]
  %v108 = vld [vmem:[%s1 + $0x24] sm:$0xf]
  %v109 = vld [vmem:[%s1 + $0x28] sm:$0xf]
  %v110 = vld [vmem:[%s1 + $0x2c] sm:$0xf]
  %v111 = vld [vmem:[%s1 + $0x30] sm:$0xf]
  %v112 = vld [vmem:[%s1 + $0x34] sm:$0xf]
  %v113 = vld [vmem:[%s1 + $0x38] sm:$0xf]
  %v114 = vld [vmem:[%s1 + $0x3c] sm:$0xf]
  %v115 = vld [vmem:[%s1 + $0x40] sm:$0xf]
  %v116 = vld [vmem:[%s1 + $0x44] sm:$0xf]
  %v117 = vld [vmem:[%s1 + $0x48] sm:$0xf]
  %v118 = vld [vmem:[%s1 + $0x4c] sm:$0xf]
  %v119 = vld [vmem:[%s1 + $0x50] sm:$0xf]
  %v120 = vld [vmem:[%s1 + $0x54] sm:$0xf]
  %v121 = vld [vmem:[%s1 + $0x58] sm:$0xf]
  %v122 = vld [vmem:[%s1 + $0x5c] sm:$0xf]
  %v123 = vld [vmem:[%s1 + $0x60] sm:$0xf]
  %v124 = vld [vmem:[%s1 + $0x64] sm:$0xf]
  %v125 = vld [vmem:[%s1 + $0x68] sm:$0xf]
  %v126 = vld [vmem:[%s1 + $0x6c] sm:$0xf]
  %v127 = vld [vmem:[%s1 + $0x70] sm:$0xf]
  %v128 = vld [vmem:[%s1 + $0x74] sm:$0xf]
  %v129 = vld [vmem:[%s1 + $0x78] sm:$0xf]
  %v130 = vld [vmem:[%s1 + $0x7c] sm:$0xf]
  %v131 = vld [vmem:[%s1 + $0x80] sm:$0xf]
  %v132 = vld [vmem:[%s1 + $0x84] sm:$0xf]
  %v133 = vld [vmem:[%s1 + $0x88] sm:$0xf]
  %v134 = vld [vmem:[%s1 + $0x8c] sm:$0xf]
  %v135 = vld [vmem:[%s1 + $0x90] sm:$0xf]
  %v136 = vld [vmem:[%s1 + $0x94] sm:$0xf]
  %v137 = vld [vmem:[%s1 + $0x98] sm:$0xf]
  %v138 = vld [vmem:[%s1 + $0x9c] sm:$0xf]
  %v139 = vld [vmem:[%s1 + $0xa0] sm:$0xf]
  %v140 = vld [vmem:[%s1 + $0xa4] sm:$0xf]
  %v141 = vld [vmem:[%s1 + $0xa8] sm:$0xf]
  %v142 = vld [vmem:[%s1 + $0xac] sm:$0xf]
  %v143 = vld [vmem:[%s1 + $0xb0] sm:$0xf]
  %v144 = vld [vmem:[%s1 + $0xb4] sm:$0xf]
  %v145 = vld [vmem:[%s1 + $0xb8] sm:$0xf]
  %v146 = vld [vmem:[%s1 + $0xbc] sm:$0xf]
  %v147 = vld [vmem:[%s1 + $0xc0] sm:$0xf]
  %v148 = vld [vmem:[%s1 + $0xc4] sm:$0xf]
  %v149 = vld [vmem:[%s1 + $0xc8] sm:$0xf]
  %v150 = vld [vmem:[%s1 + $0xcc] sm:$0xf]
  %v151 = vld [vmem:[%s1 + $0xd0] sm:$0xf]
  %v152 = vld [vmem:[%s1 + $0xd4] sm:$0xf]
  %v153 = vld [vmem:[%s1 + $0xd8] sm:$0xf]
  %v154 = vld [vmem:[%s1 + $0xdc] sm:$0xf]
  %v155 = vld [vmem:[%s1 + $0xe0] sm:$0xf]
  %v156 = vld [vmem:[%s1 + $0xe4] sm:$0xf]
  %v157 = vld [vmem:[%s1 + $0xe8] sm:$0xf]
  %v158 = vld [vmem:[%s1 + $0xec] sm:$0xf]
  %v159 = vld [vmem:[%s1 + $0xf0] sm:$0xf]
  %v160 = vld [vmem:[%s1 + $0xf4] sm:$0xf]
  %v161 = vld [vmem:[%s1 + $0xf8] sm:$0xf]
  %v162 = vld [vmem:[%s1 + $0xfc] sm:$0xf]
  %v163 = vld [vmem:[%s1 + $0x100] sm:$0xf]
  %v164 = vld [vmem:[%s1 + $0x104] sm:$0xf]
  %v165 = vld [vmem:[%s1 + $0x108] sm:$0xf]
  %v166 = vld [vmem:[%s1 + $0x10c] sm:$0xf]
  %v167 = vld [vmem:[%s1 + $0x110] sm:$0xf]
  %v168 = vld [vmem:[%s1 + $0x114] sm:$0xf]
  %v169 = vld [vmem:[%s1 + $0x118] sm:$0xf]
  %v170 = vld [vmem:[%s1 + $0x11c] sm:$0xf]
  %v171 = vld [vmem:[%s1 + $0x120] sm:$0xf]
  %v172 = vld [vmem:[%s1 + $0x124] sm:$0xf]
  %v173 = vld [vmem:[%s1 + $0x128] sm:$0xf]
  %v174 = vld [vmem:[%s1 + $0x12c] sm:$0xf]
  %v175 = vld [vmem:[%s1 + $0x130] sm:$0xf]
  %v176 = vld [vmem:[%s1 + $0x134] sm:$0xf]
  %v177 = vld [vmem:[%s1 + $0x138] sm:$0xf]
  %v178 = vld [vmem:[%s1 + $0x13c] sm:$0xf]
  %v179 = vld [vmem:[%s1 + $0x140] sm:$0xf]
  %v180 = vld [vmem:[%s1 + $0x144] sm:$0xf]
  %v181 = vld [vmem:[%s1 + $0x148] sm:$0xf]
  %v182 = vld [vmem:[%s1 + $0x14c] sm:$0xf]
  %v183 = vld [vmem:[%s1 + $0x150] sm:$0xf]
  %v184 = vld [vmem:[%s1 + $0x154] sm:$0xf]
  %v185 = vld [vmem:[%s1 + $0x158] sm:$0xf]
  %v186 = vld [vmem:[%s1 + $0x15c] sm:$0xf]
  %v187 = vld [vmem:[%s1 + $0x160] sm:$0xf]
  %v188 = vld [vmem:[%s1 + $0x164] sm:$0xf]
  %v189 = vld [vmem:[%s1 + $0x168] sm:$0xf]
  %v190 = vld [vmem:[%s1 + $0x16c] sm:$0xf]
  %v191 = vld [vmem:[%s1 + $0x170] sm:$0xf]
  %v192 = vld [vmem:[%s1 + $0x174] sm:$0xf]
  %v193 = vld [vmem:[%s1 + $0x178] sm:$0xf]
  %v194 = vld [vmem:[%s1 + $0x17c] sm:$0xf]
  %v195 = vld [vmem:[%s1 + $0x180] sm:$0xf]
  %v196 = vld [vmem:[%s1 + $0x184] sm:$0xf]
  %v197 = vld [vmem:[%s1 + $0x188] sm:$0xf]
  %v198 = vld [vmem:[%s1 + $0x18c] sm:$0xf]
  %v199 = vld [vmem:[%s1 + $0x190] sm:$0xf]
  %v200 = vld [vmem:[%s1 + $0x194] sm:$0xf]
  %v201 = vld [vmem:[%s1 + $0x198] sm:$0xf]
  %v202 = vld [vmem:[%s1 + $0x19c] sm:$0xf]
  %v203 = vld [vmem:[%s1 + $0x1a0] sm:$0xf]
  %v204 = vld [vmem:[%s1 + $0x1a4] sm:$0xf]
  %v205 = vld [vmem:[%s1 + $0x1a8] sm:$0xf]
  %v206 = vld [vmem:[%s1 + $0x1ac] sm:$0xf]
  %v207 = vld [vmem:[%s1 + $0x1b0] sm:$0xf]
  %v208 = vld [vmem:[%s1 + $0x1b4] sm:$0xf]
  %v209 = vld [vmem:[%s1 + $0x1b8] sm:$0xf]
  %v210 = vld [vmem:[%s1 + $0x1bc] sm:$0xf]
  %v211 = vld [vmem:[%s1 + $0x1c0] sm:$0xf]
  %v212 = vld [vmem:[%s1 + $0x1c4] sm:$0xf]
  %v213 = vld [vmem:[%s1 + $0x1c8] sm:$0xf]
  %v214 = vld [vmem:[%s1 + $0x1cc] sm:$0xf]
  %v215 = vld [vmem:[%s1 + $0x1d0] sm:$0xf]
  %v216 = vld [vmem:[%s1 + $0x1d4] sm:$0xf]
  %v217 = vld [vmem:[%s1 + $0x1d8] sm:$0xf]
  %v218 = vld [vmem:[%s1 + $0x1dc] sm:$0xf]
  %v219 = vld [vmem:[%s1 + $0x1e0] sm:$0xf]
  %v220 = vld [vmem:[%s1 + $0x1e4] sm:$0xf]
  %v221 = vld [vmem:[%s1 + $0x1e8] sm:$0xf]
  %v222 = vld [vmem:[%s1 + $0x1ec] sm:$0xf]
  %v223 = vld [vmem:[%s1 + $0x1f0] sm:$0xf]
  %v224 = vld [vmem:[%s1 + $0x1f4] sm:$0xf]
  %v225 = vld [vmem:[%s1 + $0x1f8] sm:$0xf]
  %v226 = vld [vmem:[%s1 + $0x1fc] sm:$0xf]
  %v227 = vld [vmem:[%s1 + $0x200] sm:$0xf]
  %v228 = vld [vmem:[%s1 + $0x204] sm:$0xf]
  %v229 = vld [vmem:[%s1 + $0x208] sm:$0xf]
  %v230 = vld [vmem:[%s1 + $0x20c] sm:$0xf]
  %v231 = vld [vmem:[%s1 + $0x210] sm:$0xf]
  %v232 = vld [vmem:[%s1 + $0x214] sm:$0xf]
  %v233 = vld [vmem:[%s1 + $0x218] sm:$0xf]
  %v234 = vld [vmem:[%s1 + $0x21c] sm:$0xf]
  %v235 = vld [vmem:[%s1 + $0x220] sm:$0xf]
  %v236 = vld [vmem:[%s1 + $0x224] sm:$0xf]
  %v237 = vld [vmem:[%s1 + $0x228] sm:$0xf]
  %v238 = vld [vmem:[%s1 + $0x22c] sm:$0xf]
  %v239 = vld [vmem:[%s1 + $0x230] sm:$0xf]
  %v240 = vld [vmem:[%s1 + $0x234] sm:$0xf]
  %v241 = vld [vmem:[%s1 + $0x238] sm:$0xf]
  %v242 = vld [vmem:[%s1 + $0x23c] sm:$0xf]
  %v243 = vld [vmem:[%s1 + $0x240] sm:$0xf]
  %v244 = vld [vmem:[%s1 + $0x244] sm:$0xf]
  %v245 = vld [vmem:[%s1 + $0x248] sm:$0xf]
  %v246 = vld [vmem:[%s1 + $0x24c] sm:$0xf]
  %v247 = vld [vmem:[%s1 + $0x250] sm:$0xf]
  %v248 = vld [vmem:[%s1 + $0x254] sm:$0xf]
  %v249 = vld [vmem:[%s1 + $0x258] sm:$0xf]
  %v250 = vld [vmem:[%s1 + $0x25c] sm:$0xf]
  %v251 = vld [vmem:[%s1 + $0x260] sm:$0xf]
  %v252 = vld [vmem:[%s1 + $0x264] sm:$0xf]
  %v253 = vld [vmem:[%s1 + $0x268] sm:$0xf]
  %v254 = vld [vmem:[%s1 + $0x26c] sm:$0xf]
  %v255 = vld [vmem:[%s1 + $0x270] sm:$0xf]
  %v256 = vld [vmem:[%s1 + $0x274] sm:$0xf]
  %v257 = vld [vmem:[%s1 + $0x278] sm:$0xf]
  %v258 = vld [vmem:[%s1 + $0x27c] sm:$0xf]
  %v259 = vld [vmem:[%s1 + $0x280] sm:$0xf]
  %v260 = vld [vmem:[%s1 + $0x284] sm:$0xf]
  %v261 = vld [vmem:[%s1 + $0x288] sm:$0xf]
  %v262 = vld [vmem:[%s1 + $0x28c] sm:$0xf]
  %v263 = vld [vmem:[%s1 + $0x290] sm:$0xf]
  %v264 = vld [vmem:[%s1 + $0x294] sm:$0xf]
  %v265 = vld [vmem:[%s1 + $0x298] sm:$0xf]
  %v266 = vld [vmem:[%s1 + $0x29c] sm:$0xf]
  %v267 = vld [vmem:[%s1 + $0x2a0] sm:$0xf]
  %v268 = vld [vmem:[%s1 + $0x2a4] sm:$0xf]
  %v269 = vld [vmem:[%s1 + $0x2a8] sm:$0xf]
  %v270 = vld [vmem:[%s1 + $0x2ac] sm:$0xf]
  %v271 = vld [vmem:[%s1 + $0x2b0] sm:$0xf]
  %v272 = vld [vmem:[%s1 + $0x2b4] sm:$0xf]
  %v273 = vld [vmem:[%s1 + $0x2b8] sm:$0xf]
  %v274 = vld [vmem:[%s1 + $0x2bc] sm:$0xf]
  %v275 = vld [vmem:[%s1 + $0x2c0] sm:$0xf]
  %v276 = vld [vmem:[%s1 + $0x2c4] sm:$0xf]
  %v277 = vld [vmem:[%s1 + $0x2c8] sm:$0xf]
  %v278 = vld [vmem:[%s1 + $0x2cc] sm:$0xf]
  %v279 = vld [vmem:[%s1 + $0x2d0] sm:$0xf]
  %v280 = vld [vmem:[%s1 + $0x2d4] sm:$0xf]
  %v281 = vld [vmem:[%s1 + $0x2d8] sm:$0xf]
  %v282 = vld [vmem:[%s1 + $0x2dc] sm:$0xf]
  %v283 = vld [vmem:[%s1 + $0x2e0] sm:$0xf]
  %v284 = vld [vmem:[%s1 + $0x2e4] sm:$0xf]
  %v285 = vld [vmem:[%s1 + $0x2e8] sm:$0xf]
  %v286 = vld [vmem:[%s1 + $0x2ec] sm:$0xf]
  %v287 = vld [vmem:[%s1 + $0x2f0] sm:$0xf]
  %v288 = vld [vmem:[%s1 + $0x2f4] sm:$0xf]
  %v289 = vld [vmem:[%s1 + $0x2f8] sm:$0xf]
  %v290 = vld [vmem:[%s1 + $0x2fc] sm:$0xf]
  %v291 = vld [vmem:[%s1 + $0x300] sm:$0xf]
  %v292 = vld [vmem:[%s1 + $0x304] sm:$0xf]
  %v293 = vld [vmem:[%s1 + $0x308] sm:$0xf]
  %v294 = vld [vmem:[%s1 + $0x30c] sm:$0xf]
  %v295 = vld [vmem:[%s1 + $0x310] sm:$0xf]
  %v296 = vld [vmem:[%s1 + $0x314] sm:$0xf]
  %v297 = vld [vmem:[%s1 + $0x318] sm:$0xf]
  %v298 = vld [vmem:[%s1 + $0x31c] sm:$0xf]
  %v299 = vld [vmem:[%s1 + $0x320] sm:$0xf]
  %v300 = vld [vmem:[%s1 + $0x324] sm:$0xf]
  %v301 = vld [vmem:[%s1 + $0x328] sm:$0xf]
  %v302 = vld [vmem:[%s1 + $0x32c] sm:$0xf]
  %v303 = vld [vmem:[%s1 + $0x330] sm:$0xf]
  %v304 = vld [vmem:[%s1 + $0x334] sm:$0xf]
  %v305 = vld [vmem:[%s1 + $0x338] sm:$0xf]
  %v306 = vld [vmem:[%s1 + $0x33c] sm:$0xf]
  %v307 = vld [vmem:[%s1 + $0x340] sm:$0xf]
  %v308 = vld [vmem:[%s1 + $0x344] sm:$0xf]
  %v309 = vld [vmem:[%s1 + $0x348] sm:$0xf]
  %v310 = vld [vmem:[%s1 + $0x34c] sm:$0xf]
  %v311 = vld [vmem:[%s1 + $0x350] sm:$0xf]
  %v312 = vld [vmem:[%s1 + $0x354] sm:$0xf]
  %v313 = vld [vmem:[%s1 + $0x358] sm:$0xf]
  %v314 = vld [vmem:[%s1 + $0x35c] sm:$0xf]
  %v315 = vld [vmem:[%s1 + $0x360] sm:$0xf]
  %v316 = vld [vmem:[%s1 + $0x364] sm:$0xf]
  %v317 = vld [vmem:[%s1 + $0x368] sm:$0xf]
  %v318 = vld [vmem:[%s1 + $0x36c] sm:$0xf]
  %v319 = vld [vmem:[%s1 + $0x370] sm:$0xf]
  %v320 = vld [vmem:[%s1 + $0x374] sm:$0xf]
  %v321 = vld [vmem:[%s1 + $0x378] sm:$0xf]
  %v322 = vld [vmem:[%s1 + $0x37c] sm:$0xf]
  %v323 = vld [vmem:[%s1 + $0x380] sm:$0xf]
  %v324 = vld [vmem:[%s1 + $0x384] sm:$0xf]
  %v325 = vld [vmem:[%s1 + $0x388] sm:$0xf]
  %v326 = vld [vmem:[%s1 + $0x38c] sm:$0xf]
  %v327 = vld [vmem:[%s1 + $0x390] sm:$0xf]
  %v328 = vld [vmem:[%s1 + $0x394] sm:$0xf]
  %v329 = vld [vmem:[%s1 + $0x398] sm:$0xf]
  %v330 = vld [vmem:[%s1 + $0x39c] sm:$0xf]
  %v331 = vld [vmem:[%s1 + $0x3a0] sm:$0xf]
  %v332 = vld [vmem:[%s1 + $0x3a4] sm:$0xf]
  %v333 = vld [vmem:[%s1 + $0x3a8] sm:$0xf]
  %v334 = vld [vmem:[%s1 + $0x3ac] sm:$0xf]
  %v335 = vld [vmem:[%s1 + $0x3b0] sm:$0xf]
  %v336 = vld [vmem:[%s1 + $0x3b4] sm:$0xf]
  %v337 = vld [vmem:[%s1 + $0x3b8] sm:$0xf]
  %v338 = vld [vmem:[%s1 + $0x3bc] sm:$0xf]
  %v339 = vld [vmem:[%s1 + $0x3c0] sm:$0xf]
  %v340 = vld [vmem:[%s1 + $0x3c4] sm:$0xf]
  %v341 = vld [vmem:[%s1 + $0x3c8] sm:$0xf]
  %v342 = vld [vmem:[%s1 + $0x3cc] sm:$0xf]
  %v343 = vld [vmem:[%s1 + $0x3d0] sm:$0xf]
  %v344 = vld [vmem:[%s1 + $0x3d4] sm:$0xf]
  %v345 = vld [vmem:[%s1 + $0x3d8] sm:$0xf]
  %v346 = vld [vmem:[%s1 + $0x3dc] sm:$0xf]
  %v347 = vld [vmem:[%s1 + $0x3e0] sm:$0xf]
  %v348 = vld [vmem:[%s1 + $0x3e4] sm:$0xf]
  %v349 = vld [vmem:[%s1 + $0x3e8] sm:$0xf]
  %v350 = vld [vmem:[%s1 + $0x3ec] sm:$0xf]
  %v351 = vld [vmem:[%s1 + $0x3f0] sm:$0xf]
  %v352 = vld [vmem:[%s1 + $0x3f4] sm:$0xf]
  %v353 = vld [vmem:[%s1 + $0x3f8] sm:$0xf]
  %v354 = vld [vmem:[%s1 + $0x3fc] sm:$0xf]
  %v355 = vld [vmem:[%s1 + $0x400] sm:$0xf]
  %v356 = vld [vmem:[%s1 + $0x404] sm:$0xf]
  %v357 = vld [vmem:[%s1 + $0x408] sm:$0xf]
  %v358 = vld [vmem:[%s1 + $0x40c] sm:$0xf]
  %v359 = vld [vmem:[%s1 + $0x410] sm:$0xf]
  %v360 = vld [vmem:[%s1 + $0x414] sm:$0xf]
  %v361 = vld [vmem:[%s1 + $0x418] sm:$0xf]
  %v362 = vld [vmem:[%s1 + $0x41c] sm:$0xf]
  %v363 = vld [vmem:[%s1 + $0x420] sm:$0xf]
  %v364 = vld [vmem:[%s1 + $0x424] sm:$0xf]
  %v365 = vld [vmem:[%s1 + $0x428] sm:$0xf]
  %v366 = vld [vmem:[%s1 + $0x42c] sm:$0xf]
  %v367 = vld [vmem:[%s1 + $0x430] sm:$0xf]
  %v368 = vld [vmem:[%s1 + $0x434] sm:$0xf]
  %v369 = vld [vmem:[%s1 + $0x438] sm:$0xf]
  %v370 = vld [vmem:[%s1 + $0x43c] sm:$0xf]
  %v371 = vld [vmem:[%s1 + $0x440] sm:$0xf]
  %v372 = vld [vmem:[%s1 + $0x444] sm:$0xf]
  %v373 = vld [vmem:[%s1 + $0x448] sm:$0xf]
  %v374 = vld [vmem:[%s1 + $0x44c] sm:$0xf]
  %v375 = vld [vmem:[%s1 + $0x450] sm:$0xf]
  %v376 = vld [vmem:[%s1 + $0x454] sm:$0xf]
  %v377 = vld [vmem:[%s1 + $0x458] sm:$0xf]
  %v378 = vld [vmem:[%s1 + $0x45c] sm:$0xf]
  %v379 = vld [vmem:[%s1 + $0x460] sm:$0xf]
  %v380 = vld [vmem:[%s1 + $0x464] sm:$0xf]
  %v381 = vld [vmem:[%s1 + $0x468] sm:$0xf]
  %v382 = vld [vmem:[%s1 + $0x46c] sm:$0xf]
  %v383 = vld [vmem:[%s1 + $0x470] sm:$0xf]
  %v384 = vld [vmem:[%s1 + $0x474] sm:$0xf]
  %v385 = vld [vmem:[%s1 + $0x478] sm:$0xf]
  %v386 = vld [vmem:[%s1 + $0x47c] sm:$0xf]
  %v387 = vld [vmem:[%s1 + $0x480] sm:$0xf]
  %v388 = vld [vmem:[%s1 + $0x484] sm:$0xf]
  %v389 = vld [vmem:[%s1 + $0x488] sm:$0xf]
  %v390 = vld [vmem:[%s1 + $0x48c] sm:$0xf]
  %v391 = vld [vmem:[%s1 + $0x490] sm:$0xf]
  %v392 = vld [vmem:[%s1 + $0x494] sm:$0xf]
  %v393 = vld [vmem:[%s1 + $0x498] sm:$0xf]
  %v394 = vld [vmem:[%s1 + $0x49c] sm:$0xf]
  %v395 = vld [vmem:[%s1 + $0x4a0] sm:$0xf]
  %v396 = vld [vmem:[%s1 + $0x4a4] sm:$0xf]
  %v397 = vld [vmem:[%s1 + $0x4a8] sm:$0xf]
  %v398 = vld [vmem:[%s1 + $0x4ac] sm:$0xf]
  %v399 = vld [vmem:[%s1 + $0x4b0] sm:$0xf]
  %v400 = vld [vmem:[%s1 + $0x4b4] sm:$0xf]
  %v401 = vld [vmem:[%s1 + $0x4b8] sm:$0xf]
  %v402 = vld [vmem:[%s1 + $0x4bc] sm:$0xf]
  %v403 = vld [vmem:[%s1 + $0x4c0] sm:$0xf]
  %v404 = vld [vmem:[%s1 + $0x4c4] sm:$0xf]
  %v405 = vld [vmem:[%s1 + $0x4c8] sm:$0xf]
  %v406 = vld [vmem:[%s1 + $0x4cc] sm:$0xf]
  %v407 = vld [vmem:[%s1 + $0x4d0] sm:$0xf]
  %v408 = vld [vmem:[%s1 + $0x4d4] sm:$0xf]
  %v409 = vld [vmem:[%s1 + $0x4d8] sm:$0xf]
  %v410 = vld [vmem:[%s1 + $0x4dc] sm:$0xf]
  %v411 = vld [vmem:[%s1 + $0x4e0] sm:$0xf]
  %v412 = vld [vmem:[%s1 + $0x4e4] sm:$0xf]
  %v413 = vld [vmem:[%s1 + $0x4e8] sm:$0xf]
  %v414 = vld [vmem:[%s1 + $0x4ec] sm:$0xf]
  %v415 = vld [vmem:[%s1 + $0x4f0] sm:$0xf]
  %v416 = vld [vmem:[%s1 + $0x4f4] sm:$0xf]
  %v417 = vld [vmem:[%s1 + $0x4f8] sm:$0xf]
  %v418 = vld [vmem:[%s1 + $0x4fc] sm:$0xf]
  %v419 = vld [vmem:[%s1 + $0x500] sm:$0xf]
  %v420 = vld [vmem:[%s1 + $0x504] sm:$0xf]
  %v421 = vld [vmem:[%s1 + $0x508] sm:$0xf]
  %v422 = vld [vmem:[%s1 + $0x50c] sm:$0xf]
  %v423 = vld [vmem:[%s1 + $0x510] sm:$0xf]
  %v424 = vld [vmem:[%s1 + $0x514] sm:$0xf]
  %v425 = vld [vmem:[%s1 + $0x518] sm:$0xf]
  %v426 = vld [vmem:[%s1 + $0x51c] sm:$0xf]
  %v427 = vld [vmem:[%s1 + $0x520] sm:$0xf]
  %v428 = vld [vmem:[%s1 + $0x524] sm:$0xf]
  %v429 = vld [vmem:[%s1 + $0x528] sm:$0xf]
  %v430 = vld [vmem:[%s1 + $0x52c] sm:$0xf]
  %v431 = vld [vmem:[%s1 + $0x530] sm:$0xf]
  %v432 = vld [vmem:[%s1 + $0x534] sm:$0xf]
  %v433 = vld [vmem:[%s1 + $0x538] sm:$0xf]
  %v434 = vld [vmem:[%s1 + $0x53c] sm:$0xf]
  %v435 = vld [vmem:[%s1 + $0x540] sm:$0xf]
  %v436 = vld [vmem:[%s1 + $0x544] sm:$0xf]
  %v437 = vld [vmem:[%s1 + $0x548] sm:$0xf]
  %v438 = vld [vmem:[%s1 + $0x54c] sm:$0xf]
  %v439 = vld [vmem:[%s1 + $0x550] sm:$0xf]
  %v440 = vld [vmem:[%s1 + $0x554] sm:$0xf]
  %v441 = vld [vmem:[%s1 + $0x558] sm:$0xf]
  %v442 = vld [vmem:[%s1 + $0x55c] sm:$0xf]
  %v443 = vld [vmem:[%s1 + $0x560] sm:$0xf]
  %v444 = vld [vmem:[%s1 + $0x564] sm:$0xf]
  %v445 = vld [vmem:[%s1 + $0x568] sm:$0xf]
  %v446 = vld [vmem:[%s1 + $0x56c] sm:$0xf]
  %v447 = vld [vmem:[%s1 + $0x570] sm:$0xf]
  %v448 = vld [vmem:[%s1 + $0x574] sm:$0xf]
  %v449 = vld [vmem:[%s1 + $0x578] sm:$0xf]
  %v450 = vld [vmem:[%s1 + $0x57c] sm:$0xf]
  %v451 = vld [vmem:[%s1 + $0x580] sm:$0xf]
  %v452 = vld [vmem:[%s1 + $0x584] sm:$0xf]
  %v453 = vld [vmem:[%s1 + $0x588] sm:$0xf]
  %v454 = vld [vmem:[%s1 + $0x58c] sm:$0xf]
  %v455 = vld [vmem:[%s1 + $0x590] sm:$0xf]
  %v456 = vld [vmem:[%s1 + $0x594] sm:$0xf]
  %v457 = vld [vmem:[%s1 + $0x598] sm:$0xf]
  %v458 = vld [vmem:[%s1 + $0x59c] sm:$0xf]
  %v459 = vld [vmem:[%s1 + $0x5a0] sm:$0xf]
  %v460 = vld [vmem:[%s1 + $0x5a4] sm:$0xf]
  %v461 = vld [vmem:[%s1 + $0x5a8] sm:$0xf]
  %v462 = vld [vmem:[%s1 + $0x5ac] sm:$0xf]
  %v463 = vld [vmem:[%s1 + $0x5b0] sm:$0xf]
  %v464 = vld [vmem:[%s1 + $0x5b4] sm:$0xf]
  %v465 = vld [vmem:[%s1 + $0x5b8] sm:$0xf]
  %v466 = vld [vmem:[%s1 + $0x5bc] sm:$0xf]
  %v467 = vld [vmem:[%s1 + $0x5c0] sm:$0xf]
  %v468 = vld [vmem:[%s1 + $0x5c4] sm:$0xf]
  %v469 = vld [vmem:[%s1 + $0x5c8] sm:$0xf]
  %v470 = vld [vmem:[%s1 + $0x5cc] sm:$0xf]
  %v471 = vld [vmem:[%s1 + $0x5d0] sm:$0xf]
  %v472 = vld [vmem:[%s1 + $0x5d4] sm:$0xf]
  %v473 = vld [vmem:[%s1 + $0x5d8] sm:$0xf]
  %v474 = vld [vmem:[%s1 + $0x5dc] sm:$0xf]
  %v475 = vld [vmem:[%s1 + $0x5e0] sm:$0xf]
  %v476 = vld [vmem:[%s1 + $0x5e4] sm:$0xf]
  %v477 = vld [vmem:[%s1 + $0x5e8] sm:$0xf]
  %v478 = vld [vmem:[%s1 + $0x5ec] sm:$0xf]
  %v479 = vld [vmem:[%s1 + $0x5f0] sm:$0xf]
  %v480 = vld [vmem:[%s1 + $0x5f4] sm:$0xf]
  %v481 = vld [vmem:[%s1 + $0x5f8] sm:$0xf]
  %v482 = vld [vmem:[%s1 + $0x5fc] sm:$0xf]
  %v483 = vld [vmem:[%s2] sm:$0x1]
  %v485 = vlaneseq
  %v486 = vshrl.u32 %v485, 7
  %v487 = vsub.s32 0, %v486
  %v488 = vrot.slane %v483, %v487
  %v874 = vunpack.c.l.b16 %v99
  %v875 = vunpack.c.l.b16 %v100
  %v876 = vunpack.c.l.b16 %v101
  %v877 = vunpack.c.l.b16 %v102
  %v878 = vunpack.c.l.b16 %v103
  %v879 = vunpack.c.l.b16 %v104
  %v880 = vunpack.c.l.b16 %v105
  %v881 = vunpack.c.l.b16 %v106
  %v882 = vunpack.c.l.b16 %v107
  %v883 = vunpack.c.l.b16 %v108
  %v884 = vunpack.c.l.b16 %v109
  %v885 = vunpack.c.l.b16 %v110
  %v886 = vunpack.c.l.b16 %v111
  %v887 = vunpack.c.l.b16 %v112
  %v888 = vunpack.c.l.b16 %v113
  %v889 = vunpack.c.l.b16 %v114
  %v890 = vunpack.c.l.b16 %v115
  %v891 = vunpack.c.l.b16 %v116
  %v892 = vunpack.c.l.b16 %v117
  %v893 = vunpack.c.l.b16 %v118
  %v894 = vunpack.c.l.b16 %v119
  %v895 = vunpack.c.l.b16 %v120
  %v896 = vunpack.c.l.b16 %v121
  %v897 = vunpack.c.l.b16 %v122
  %v898 = vunpack.c.l.b16 %v123
  %v899 = vunpack.c.l.b16 %v124
  %v900 = vunpack.c.l.b16 %v125
  %v901 = vunpack.c.l.b16 %v126
  %v902 = vunpack.c.l.b16 %v127
  %v903 = vunpack.c.l.b16 %v128
  %v904 = vunpack.c.l.b16 %v129
  %v905 = vunpack.c.l.b16 %v130
  %v906 = vunpack.c.l.b16 %v131
  %v907 = vunpack.c.l.b16 %v132
  %v908 = vunpack.c.l.b16 %v133
  %v909 = vunpack.c.l.b16 %v134
  %v910 = vunpack.c.l.b16 %v135
  %v911 = vunpack.c.l.b16 %v136
  %v912 = vunpack.c.l.b16 %v137
  %v913 = vunpack.c.l.b16 %v138
  %v914 = vunpack.c.l.b16 %v139
  %v915 = vunpack.c.l.b16 %v140
  %v916 = vunpack.c.l.b16 %v141
  %v917 = vunpack.c.l.b16 %v142
  %v918 = vunpack.c.l.b16 %v143
  %v919 = vunpack.c.l.b16 %v144
  %v920 = vunpack.c.l.b16 %v145
  %v921 = vunpack.c.l.b16 %v146
  %v922 = vunpack.c.l.b16 %v147
  %v923 = vunpack.c.l.b16 %v148
  %v924 = vunpack.c.l.b16 %v149
  %v925 = vunpack.c.l.b16 %v150
  %v926 = vunpack.c.l.b16 %v151
  %v927 = vunpack.c.l.b16 %v152
  %v928 = vunpack.c.l.b16 %v153
  %v929 = vunpack.c.l.b16 %v154
  %v930 = vunpack.c.l.b16 %v155
  %v931 = vunpack.c.l.b16 %v156
  %v932 = vunpack.c.l.b16 %v157
  %v933 = vunpack.c.l.b16 %v158
  %v934 = vunpack.c.l.b16 %v159
  %v935 = vunpack.c.l.b16 %v160
  %v936 = vunpack.c.l.b16 %v161
  %v937 = vunpack.c.l.b16 %v162
  %v938 = vunpack.c.l.b16 %v163
  %v939 = vunpack.c.l.b16 %v164
  %v940 = vunpack.c.l.b16 %v165
  %v941 = vunpack.c.l.b16 %v166
  %v942 = vunpack.c.l.b16 %v167
  %v943 = vunpack.c.l.b16 %v168
  %v944 = vunpack.c.l.b16 %v169
  %v945 = vunpack.c.l.b16 %v170
  %v946 = vunpack.c.l.b16 %v171
  %v947 = vunpack.c.l.b16 %v172
  %v948 = vunpack.c.l.b16 %v173
  %v949 = vunpack.c.l.b16 %v174
  %v950 = vunpack.c.l.b16 %v175
  %v951 = vunpack.c.l.b16 %v176
  %v952 = vunpack.c.l.b16 %v177
  %v953 = vunpack.c.l.b16 %v178
  %v954 = vunpack.c.l.b16 %v179
  %v955 = vunpack.c.l.b16 %v180
  %v956 = vunpack.c.l.b16 %v181
  %v957 = vunpack.c.l.b16 %v182
  %v958 = vunpack.c.l.b16 %v183
  %v959 = vunpack.c.l.b16 %v184
  %v960 = vunpack.c.l.b16 %v185
  %v961 = vunpack.c.l.b16 %v186
  %v962 = vunpack.c.l.b16 %v187
  %v963 = vunpack.c.l.b16 %v188
  %v964 = vunpack.c.l.b16 %v189
  %v965 = vunpack.c.l.b16 %v190
  %v966 = vunpack.c.l.b16 %v191
  %v967 = vunpack.c.l.b16 %v192
  %v968 = vunpack.c.l.b16 %v193
  %v969 = vunpack.c.l.b16 %v194
  %v970 = vunpack.c.l.b16 %v195
  %v971 = vunpack.c.l.b16 %v196
  %v972 = vunpack.c.l.b16 %v197
  %v973 = vunpack.c.l.b16 %v198
  %v974 = vunpack.c.l.b16 %v199
  %v975 = vunpack.c.l.b16 %v200
  %v976 = vunpack.c.l.b16 %v201
  %v977 = vunpack.c.l.b16 %v202
  %v978 = vunpack.c.l.b16 %v203
  %v979 = vunpack.c.l.b16 %v204
  %v980 = vunpack.c.l.b16 %v205
  %v981 = vunpack.c.l.b16 %v206
  %v982 = vunpack.c.l.b16 %v207
  %v983 = vunpack.c.l.b16 %v208
  %v984 = vunpack.c.l.b16 %v209
  %v985 = vunpack.c.l.b16 %v210
  %v986 = vunpack.c.l.b16 %v211
  %v987 = vunpack.c.l.b16 %v212
  %v988 = vunpack.c.l.b16 %v213
  %v989 = vunpack.c.l.b16 %v214
  %v990 = vunpack.c.l.b16 %v215
  %v991 = vunpack.c.l.b16 %v216
  %v992 = vunpack.c.l.b16 %v217
  %v993 = vunpack.c.l.b16 %v218
  %v994 = vunpack.c.l.b16 %v219
  %v995 = vunpack.c.l.b16 %v220
  %v996 = vunpack.c.l.b16 %v221
  %v997 = vunpack.c.l.b16 %v222
  %v998 = vunpack.c.l.b16 %v223
  %v999 = vunpack.c.l.b16 %v224
  %v1000 = vunpack.c.l.b16 %v225
  %v1001 = vunpack.c.l.b16 %v226
  %v1002 = vunpack.c.l.b16 %v227
  %v1003 = vunpack.c.l.b16 %v228
  %v1004 = vunpack.c.l.b16 %v229
  %v1005 = vunpack.c.l.b16 %v230
  %v1006 = vunpack.c.l.b16 %v231
  %v1007 = vunpack.c.l.b16 %v232
  %v1008 = vunpack.c.l.b16 %v233
  %v1009 = vunpack.c.l.b16 %v234
  %v1010 = vunpack.c.l.b16 %v235
  %v1011 = vunpack.c.l.b16 %v236
  %v1012 = vunpack.c.l.b16 %v237
  %v1013 = vunpack.c.l.b16 %v238
  %v1014 = vunpack.c.l.b16 %v239
  %v1015 = vunpack.c.l.b16 %v240
  %v1016 = vunpack.c.l.b16 %v241
  %v1017 = vunpack.c.l.b16 %v242
  %v1018 = vunpack.c.l.b16 %v243
  %v1019 = vunpack.c.l.b16 %v244
  %v1020 = vunpack.c.l.b16 %v245
  %v1021 = vunpack.c.l.b16 %v246
  %v1022 = vunpack.c.l.b16 %v247
  %v1023 = vunpack.c.l.b16 %v248
  %v1024 = vunpack.c.l.b16 %v249
  %v1025 = vunpack.c.l.b16 %v250
  %v1026 = vunpack.c.l.b16 %v251
  %v1027 = vunpack.c.l.b16 %v252
  %v1028 = vunpack.c.l.b16 %v253
  %v1029 = vunpack.c.l.b16 %v254
  %v1030 = vunpack.c.l.b16 %v255
  %v1031 = vunpack.c.l.b16 %v256
  %v1032 = vunpack.c.l.b16 %v257
  %v1033 = vunpack.c.l.b16 %v258
  %v1034 = vunpack.c.l.b16 %v259
  %v1035 = vunpack.c.l.b16 %v260
  %v1036 = vunpack.c.l.b16 %v261
  %v1037 = vunpack.c.l.b16 %v262
  %v1038 = vunpack.c.l.b16 %v263
  %v1039 = vunpack.c.l.b16 %v264
  %v1040 = vunpack.c.l.b16 %v265
  %v1041 = vunpack.c.l.b16 %v266
  %v1042 = vunpack.c.l.b16 %v267
  %v1043 = vunpack.c.l.b16 %v268
  %v1044 = vunpack.c.l.b16 %v269
  %v1045 = vunpack.c.l.b16 %v270
  %v1046 = vunpack.c.l.b16 %v271
  %v1047 = vunpack.c.l.b16 %v272
  %v1048 = vunpack.c.l.b16 %v273
  %v1049 = vunpack.c.l.b16 %v274
  %v1050 = vunpack.c.l.b16 %v275
  %v1051 = vunpack.c.l.b16 %v276
  %v1052 = vunpack.c.l.b16 %v277
  %v1053 = vunpack.c.l.b16 %v278
  %v1054 = vunpack.c.l.b16 %v279
  %v1055 = vunpack.c.l.b16 %v280
  %v1056 = vunpack.c.l.b16 %v281
  %v1057 = vunpack.c.l.b16 %v282
  %v1058 = vunpack.c.l.b16 %v283
  %v1059 = vunpack.c.l.b16 %v284
  %v1060 = vunpack.c.l.b16 %v285
  %v1061 = vunpack.c.l.b16 %v286
  %v1062 = vunpack.c.l.b16 %v287
  %v1063 = vunpack.c.l.b16 %v288
  %v1064 = vunpack.c.l.b16 %v289
  %v1065 = vunpack.c.l.b16 %v290
  %v1066 = vunpack.c.l.b16 %v291
  %v1067 = vunpack.c.l.b16 %v292
  %v1068 = vunpack.c.l.b16 %v293
  %v1069 = vunpack.c.l.b16 %v294
  %v1070 = vunpack.c.l.b16 %v295
  %v1071 = vunpack.c.l.b16 %v296
  %v1072 = vunpack.c.l.b16 %v297
  %v1073 = vunpack.c.l.b16 %v298
  %v1074 = vunpack.c.l.b16 %v299
  %v1075 = vunpack.c.l.b16 %v300
  %v1076 = vunpack.c.l.b16 %v301
  %v1077 = vunpack.c.l.b16 %v302
  %v1078 = vunpack.c.l.b16 %v303
  %v1079 = vunpack.c.l.b16 %v304
  %v1080 = vunpack.c.l.b16 %v305
  %v1081 = vunpack.c.l.b16 %v306
  %v1082 = vunpack.c.l.b16 %v307
  %v1083 = vunpack.c.l.b16 %v308
  %v1084 = vunpack.c.l.b16 %v309
  %v1085 = vunpack.c.l.b16 %v310
  %v1086 = vunpack.c.l.b16 %v311
  %v1087 = vunpack.c.l.b16 %v312
  %v1088 = vunpack.c.l.b16 %v313
  %v1089 = vunpack.c.l.b16 %v314
  %v1090 = vunpack.c.l.b16 %v315
  %v1091 = vunpack.c.l.b16 %v316
  %v1092 = vunpack.c.l.b16 %v317
  %v1093 = vunpack.c.l.b16 %v318
  %v1094 = vunpack.c.l.b16 %v319
  %v1095 = vunpack.c.l.b16 %v320
  %v1096 = vunpack.c.l.b16 %v321
  %v1097 = vunpack.c.l.b16 %v322
  %v1098 = vunpack.c.l.b16 %v323
  %v1099 = vunpack.c.l.b16 %v324
  %v1100 = vunpack.c.l.b16 %v325
  %v1101 = vunpack.c.l.b16 %v326
  %v1102 = vunpack.c.l.b16 %v327
  %v1103 = vunpack.c.l.b16 %v328
  %v1104 = vunpack.c.l.b16 %v329
  %v1105 = vunpack.c.l.b16 %v330
  %v1106 = vunpack.c.l.b16 %v331
  %v1107 = vunpack.c.l.b16 %v332
  %v1108 = vunpack.c.l.b16 %v333
  %v1109 = vunpack.c.l.b16 %v334
  %v1110 = vunpack.c.l.b16 %v335
  %v1111 = vunpack.c.l.b16 %v336
  %v1112 = vunpack.c.l.b16 %v337
  %v1113 = vunpack.c.l.b16 %v338
  %v1114 = vunpack.c.l.b16 %v339
  %v1115 = vunpack.c.l.b16 %v340
  %v1116 = vunpack.c.l.b16 %v341
  %v1117 = vunpack.c.l.b16 %v342
  %v1118 = vunpack.c.l.b16 %v343
  %v1119 = vunpack.c.l.b16 %v344
  %v1120 = vunpack.c.l.b16 %v345
  %v1121 = vunpack.c.l.b16 %v346
  %v1122 = vunpack.c.l.b16 %v347
  %v1123 = vunpack.c.l.b16 %v348
  %v1124 = vunpack.c.l.b16 %v349
  %v1125 = vunpack.c.l.b16 %v350
  %v1126 = vunpack.c.l.b16 %v351
  %v1127 = vunpack.c.l.b16 %v352
  %v1128 = vunpack.c.l.b16 %v353
  %v1129 = vunpack.c.l.b16 %v354
  %v1130 = vunpack.c.l.b16 %v355
  %v1131 = vunpack.c.l.b16 %v356
  %v1132 = vunpack.c.l.b16 %v357
  %v1133 = vunpack.c.l.b16 %v358
  %v1134 = vunpack.c.l.b16 %v359
  %v1135 = vunpack.c.l.b16 %v360
  %v1136 = vunpack.c.l.b16 %v361
  %v1137 = vunpack.c.l.b16 %v362
  %v1138 = vunpack.c.l.b16 %v363
  %v1139 = vunpack.c.l.b16 %v364
  %v1140 = vunpack.c.l.b16 %v365
  %v1141 = vunpack.c.l.b16 %v366
  %v1142 = vunpack.c.l.b16 %v367
  %v1143 = vunpack.c.l.b16 %v368
  %v1144 = vunpack.c.l.b16 %v369
  %v1145 = vunpack.c.l.b16 %v370
  %v1146 = vunpack.c.l.b16 %v371
  %v1147 = vunpack.c.l.b16 %v372
  %v1148 = vunpack.c.l.b16 %v373
  %v1149 = vunpack.c.l.b16 %v374
  %v1150 = vunpack.c.l.b16 %v375
  %v1151 = vunpack.c.l.b16 %v376
  %v1152 = vunpack.c.l.b16 %v377
  %v1153 = vunpack.c.l.b16 %v378
  %v1154 = vunpack.c.l.b16 %v379
  %v1155 = vunpack.c.l.b16 %v380
  %v1156 = vunpack.c.l.b16 %v381
  %v1157 = vunpack.c.l.b16 %v382
  %v1158 = vunpack.c.l.b16 %v383
  %v1159 = vunpack.c.l.b16 %v384
  %v1160 = vunpack.c.l.b16 %v385
  %v1161 = vunpack.c.l.b16 %v386
  %v1162 = vunpack.c.l.b16 %v387
  %v1163 = vunpack.c.l.b16 %v388
  %v1164 = vunpack.c.l.b16 %v389
  %v1165 = vunpack.c.l.b16 %v390
  %v1166 = vunpack.c.l.b16 %v391
  %v1167 = vunpack.c.l.b16 %v392
  %v1168 = vunpack.c.l.b16 %v393
  %v1169 = vunpack.c.l.b16 %v394
  %v1170 = vunpack.c.l.b16 %v395
  %v1171 = vunpack.c.l.b16 %v396
  %v1172 = vunpack.c.l.b16 %v397
  %v1173 = vunpack.c.l.b16 %v398
  %v1174 = vunpack.c.l.b16 %v399
  %v1175 = vunpack.c.l.b16 %v400
  %v1176 = vunpack.c.l.b16 %v401
  %v1177 = vunpack.c.l.b16 %v402
  %v1178 = vunpack.c.l.b16 %v403
  %v1179 = vunpack.c.l.b16 %v404
  %v1180 = vunpack.c.l.b16 %v405
  %v1181 = vunpack.c.l.b16 %v406
  %v1182 = vunpack.c.l.b16 %v407
  %v1183 = vunpack.c.l.b16 %v408
  %v1184 = vunpack.c.l.b16 %v409
  %v1185 = vunpack.c.l.b16 %v410
  %v1186 = vunpack.c.l.b16 %v411
  %v1187 = vunpack.c.l.b16 %v412
  %v1188 = vunpack.c.l.b16 %v413
  %v1189 = vunpack.c.l.b16 %v414
  %v1190 = vunpack.c.l.b16 %v415
  %v1191 = vunpack.c.l.b16 %v416
  %v1192 = vunpack.c.l.b16 %v417
  %v1193 = vunpack.c.l.b16 %v418
  %v1194 = vunpack.c.l.b16 %v419
  %v1195 = vunpack.c.l.b16 %v420
  %v1196 = vunpack.c.l.b16 %v421
  %v1197 = vunpack.c.l.b16 %v422
  %v1198 = vunpack.c.l.b16 %v423
  %v1199 = vunpack.c.l.b16 %v424
  %v1200 = vunpack.c.l.b16 %v425
  %v1201 = vunpack.c.l.b16 %v426
  %v1202 = vunpack.c.l.b16 %v427
  %v1203 = vunpack.c.l.b16 %v428
  %v1204 = vunpack.c.l.b16 %v429
  %v1205 = vunpack.c.l.b16 %v430
  %v1206 = vunpack.c.l.b16 %v431
  %v1207 = vunpack.c.l.b16 %v432
  %v1208 = vunpack.c.l.b16 %v433
  %v1209 = vunpack.c.l.b16 %v434
  %v1210 = vunpack.c.l.b16 %v435
  %v1211 = vunpack.c.l.b16 %v436
  %v1212 = vunpack.c.l.b16 %v437
  %v1213 = vunpack.c.l.b16 %v438
  %v1214 = vunpack.c.l.b16 %v439
  %v1215 = vunpack.c.l.b16 %v440
  %v1216 = vunpack.c.l.b16 %v441
  %v1217 = vunpack.c.l.b16 %v442
  %v1218 = vunpack.c.l.b16 %v443
  %v1219 = vunpack.c.l.b16 %v444
  %v1220 = vunpack.c.l.b16 %v445
  %v1221 = vunpack.c.l.b16 %v446
  %v1222 = vunpack.c.l.b16 %v447
  %v1223 = vunpack.c.l.b16 %v448
  %v1224 = vunpack.c.l.b16 %v449
  %v1225 = vunpack.c.l.b16 %v450
  %v1226 = vunpack.c.l.b16 %v451
  %v1227 = vunpack.c.l.b16 %v452
  %v1228 = vunpack.c.l.b16 %v453
  %v1229 = vunpack.c.l.b16 %v454
  %v1230 = vunpack.c.l.b16 %v455
  %v1231 = vunpack.c.l.b16 %v456
  %v1232 = vunpack.c.l.b16 %v457
  %v1233 = vunpack.c.l.b16 %v458
  %v1234 = vunpack.c.l.b16 %v459
  %v1235 = vunpack.c.l.b16 %v460
  %v1236 = vunpack.c.l.b16 %v461
  %v1237 = vunpack.c.l.b16 %v462
  %v1238 = vunpack.c.l.b16 %v463
  %v1239 = vunpack.c.l.b16 %v464
  %v1240 = vunpack.c.l.b16 %v465
  %v1241 = vunpack.c.l.b16 %v466
  %v1242 = vunpack.c.l.b16 %v467
  %v1243 = vunpack.c.l.b16 %v468
  %v1244 = vunpack.c.l.b16 %v469
  %v1245 = vunpack.c.l.b16 %v470
  %v1246 = vunpack.c.l.b16 %v471
  %v1247 = vunpack.c.l.b16 %v472
  %v1248 = vunpack.c.l.b16 %v473
  %v1249 = vunpack.c.l.b16 %v474
  %v1250 = vunpack.c.l.b16 %v475
  %v1251 = vunpack.c.l.b16 %v476
  %v1252 = vunpack.c.l.b16 %v477
  %v1253 = vunpack.c.l.b16 %v478
  %v1254 = vunpack.c.l.b16 %v479
  %v1255 = vunpack.c.l.b16 %v480
  %v1256 = vunpack.c.l.b16 %v481
  %v1257 = vunpack.c.l.b16 %v482
  %v1258 = vpack.c.b16 %v875, %v874
  %v1259 = vpack.c.b16 %v877, %v876
  %v1260 = vpack.c.b16 %v879, %v878
  %v1261 = vpack.c.b16 %v881, %v880
  %v1262 = vpack.c.b16 %v883, %v882
  %v1263 = vpack.c.b16 %v885, %v884
  %v1264 = vpack.c.b16 %v887, %v886
  %v1265 = vpack.c.b16 %v889, %v888
  %v1266 = vpack.c.b16 %v891, %v890
  %v1267 = vpack.c.b16 %v893, %v892
  %v1268 = vpack.c.b16 %v895, %v894
  %v1269 = vpack.c.b16 %v897, %v896
  %v1270 = vpack.c.b16 %v899, %v898
  %v1271 = vpack.c.b16 %v901, %v900
  %v1272 = vpack.c.b16 %v903, %v902
  %v1273 = vpack.c.b16 %v905, %v904
  %v1274 = vpack.c.b16 %v907, %v906
  %v1275 = vpack.c.b16 %v909, %v908
  %v1276 = vpack.c.b16 %v911, %v910
  %v1277 = vpack.c.b16 %v913, %v912
  %v1278 = vpack.c.b16 %v915, %v914
  %v1279 = vpack.c.b16 %v917, %v916
  %v1280 = vpack.c.b16 %v919, %v918
  %v1281 = vpack.c.b16 %v921, %v920
  %v1282 = vpack.c.b16 %v923, %v922
  %v1283 = vpack.c.b16 %v925, %v924
  %v1284 = vpack.c.b16 %v927, %v926
  %v1285 = vpack.c.b16 %v929, %v928
  %v1286 = vpack.c.b16 %v931, %v930
  %v1287 = vpack.c.b16 %v933, %v932
  %v1288 = vpack.c.b16 %v935, %v934
  %v1289 = vpack.c.b16 %v937, %v936
  %v1290 = vpack.c.b16 %v939, %v938
  %v1291 = vpack.c.b16 %v941, %v940
  %v1292 = vpack.c.b16 %v943, %v942
  %v1293 = vpack.c.b16 %v945, %v944
  %v1294 = vpack.c.b16 %v947, %v946
  %v1295 = vpack.c.b16 %v949, %v948
  %v1296 = vpack.c.b16 %v951, %v950
  %v1297 = vpack.c.b16 %v953, %v952
  %v1298 = vpack.c.b16 %v955, %v954
  %v1299 = vpack.c.b16 %v957, %v956
  %v1300 = vpack.c.b16 %v959, %v958
  %v1301 = vpack.c.b16 %v961, %v960
  %v1302 = vpack.c.b16 %v963, %v962
  %v1303 = vpack.c.b16 %v965, %v964
  %v1304 = vpack.c.b16 %v967, %v966
  %v1305 = vpack.c.b16 %v969, %v968
  %v1306 = vpack.c.b16 %v971, %v970
  %v1307 = vpack.c.b16 %v973, %v972
  %v1308 = vpack.c.b16 %v975, %v974
  %v1309 = vpack.c.b16 %v977, %v976
  %v1310 = vpack.c.b16 %v979, %v978
  %v1311 = vpack.c.b16 %v981, %v980
  %v1312 = vpack.c.b16 %v983, %v982
  %v1313 = vpack.c.b16 %v985, %v984
  %v1314 = vpack.c.b16 %v987, %v986
  %v1315 = vpack.c.b16 %v989, %v988
  %v1316 = vpack.c.b16 %v991, %v990
  %v1317 = vpack.c.b16 %v993, %v992
  %v1318 = vpack.c.b16 %v995, %v994
  %v1319 = vpack.c.b16 %v997, %v996
  %v1320 = vpack.c.b16 %v999, %v998
  %v1321 = vpack.c.b16 %v1001, %v1000
  %v1322 = vpack.c.b16 %v1003, %v1002
  %v1323 = vpack.c.b16 %v1005, %v1004
  %v1324 = vpack.c.b16 %v1007, %v1006
  %v1325 = vpack.c.b16 %v1009, %v1008
  %v1326 = vpack.c.b16 %v1011, %v1010
  %v1327 = vpack.c.b16 %v1013, %v1012
  %v1328 = vpack.c.b16 %v1015, %v1014
  %v1329 = vpack.c.b16 %v1017, %v1016
  %v1330 = vpack.c.b16 %v1019, %v1018
  %v1331 = vpack.c.b16 %v1021, %v1020
  %v1332 = vpack.c.b16 %v1023, %v1022
  %v1333 = vpack.c.b16 %v1025, %v1024
  %v1334 = vpack.c.b16 %v1027, %v1026
  %v1335 = vpack.c.b16 %v1029, %v1028
  %v1336 = vpack.c.b16 %v1031, %v1030
  %v1337 = vpack.c.b16 %v1033, %v1032
  %v1338 = vpack.c.b16 %v1035, %v1034
  %v1339 = vpack.c.b16 %v1037, %v1036
  %v1340 = vpack.c.b16 %v1039, %v1038
  %v1341 = vpack.c.b16 %v1041, %v1040
  %v1342 = vpack.c.b16 %v1043, %v1042
  %v1343 = vpack.c.b16 %v1045, %v1044
  %v1344 = vpack.c.b16 %v1047, %v1046
  %v1345 = vpack.c.b16 %v1049, %v1048
  %v1346 = vpack.c.b16 %v1051, %v1050
  %v1347 = vpack.c.b16 %v1053, %v1052
  %v1348 = vpack.c.b16 %v1055, %v1054
  %v1349 = vpack.c.b16 %v1057, %v1056
  %v1350 = vpack.c.b16 %v1059, %v1058
  %v1351 = vpack.c.b16 %v1061, %v1060
  %v1352 = vpack.c.b16 %v1063, %v1062
  %v1353 = vpack.c.b16 %v1065, %v1064
  %v1354 = vpack.c.b16 %v1067, %v1066
  %v1355 = vpack.c.b16 %v1069, %v1068
  %v1356 = vpack.c.b16 %v1071, %v1070
  %v1357 = vpack.c.b16 %v1073, %v1072
  %v1358 = vpack.c.b16 %v1075, %v1074
  %v1359 = vpack.c.b16 %v1077, %v1076
  %v1360 = vpack.c.b16 %v1079, %v1078
  %v1361 = vpack.c.b16 %v1081, %v1080
  %v1362 = vpack.c.b16 %v1083, %v1082
  %v1363 = vpack.c.b16 %v1085, %v1084
  %v1364 = vpack.c.b16 %v1087, %v1086
  %v1365 = vpack.c.b16 %v1089, %v1088
  %v1366 = vpack.c.b16 %v1091, %v1090
  %v1367 = vpack.c.b16 %v1093, %v1092
  %v1368 = vpack.c.b16 %v1095, %v1094
  %v1369 = vpack.c.b16 %v1097, %v1096
  %v1370 = vpack.c.b16 %v1099, %v1098
  %v1371 = vpack.c.b16 %v1101, %v1100
  %v1372 = vpack.c.b16 %v1103, %v1102
  %v1373 = vpack.c.b16 %v1105, %v1104
  %v1374 = vpack.c.b16 %v1107, %v1106
  %v1375 = vpack.c.b16 %v1109, %v1108
  %v1376 = vpack.c.b16 %v1111, %v1110
  %v1377 = vpack.c.b16 %v1113, %v1112
  %v1378 = vpack.c.b16 %v1115, %v1114
  %v1379 = vpack.c.b16 %v1117, %v1116
  %v1380 = vpack.c.b16 %v1119, %v1118
  %v1381 = vpack.c.b16 %v1121, %v1120
  %v1382 = vpack.c.b16 %v1123, %v1122
  %v1383 = vpack.c.b16 %v1125, %v1124
  %v1384 = vpack.c.b16 %v1127, %v1126
  %v1385 = vpack.c.b16 %v1129, %v1128
  %v1386 = vpack.c.b16 %v1131, %v1130
  %v1387 = vpack.c.b16 %v1133, %v1132
  %v1388 = vpack.c.b16 %v1135, %v1134
  %v1389 = vpack.c.b16 %v1137, %v1136
  %v1390 = vpack.c.b16 %v1139, %v1138
  %v1391 = vpack.c.b16 %v1141, %v1140
  %v1392 = vpack.c.b16 %v1143, %v1142
  %v1393 = vpack.c.b16 %v1145, %v1144
  %v1394 = vpack.c.b16 %v1147, %v1146
  %v1395 = vpack.c.b16 %v1149, %v1148
  %v1396 = vpack.c.b16 %v1151, %v1150
  %v1397 = vpack.c.b16 %v1153, %v1152
  %v1398 = vpack.c.b16 %v1155, %v1154
  %v1399 = vpack.c.b16 %v1157, %v1156
  %v1400 = vpack.c.b16 %v1159, %v1158
  %v1401 = vpack.c.b16 %v1161, %v1160
  %v1402 = vpack.c.b16 %v1163, %v1162
  %v1403 = vpack.c.b16 %v1165, %v1164
  %v1404 = vpack.c.b16 %v1167, %v1166
  %v1405 = vpack.c.b16 %v1169, %v1168
  %v1406 = vpack.c.b16 %v1171, %v1170
  %v1407 = vpack.c.b16 %v1173, %v1172
  %v1408 = vpack.c.b16 %v1175, %v1174
  %v1409 = vpack.c.b16 %v1177, %v1176
  %v1410 = vpack.c.b16 %v1179, %v1178
  %v1411 = vpack.c.b16 %v1181, %v1180
  %v1412 = vpack.c.b16 %v1183, %v1182
  %v1413 = vpack.c.b16 %v1185, %v1184
  %v1414 = vpack.c.b16 %v1187, %v1186
  %v1415 = vpack.c.b16 %v1189, %v1188
  %v1416 = vpack.c.b16 %v1191, %v1190
  %v1417 = vpack.c.b16 %v1193, %v1192
  %v1418 = vpack.c.b16 %v1195, %v1194
  %v1419 = vpack.c.b16 %v1197, %v1196
  %v1420 = vpack.c.b16 %v1199, %v1198
  %v1421 = vpack.c.b16 %v1201, %v1200
  %v1422 = vpack.c.b16 %v1203, %v1202
  %v1423 = vpack.c.b16 %v1205, %v1204
  %v1424 = vpack.c.b16 %v1207, %v1206
  %v1425 = vpack.c.b16 %v1209, %v1208
  %v1426 = vpack.c.b16 %v1211, %v1210
  %v1427 = vpack.c.b16 %v1213, %v1212
  %v1428 = vpack.c.b16 %v1215, %v1214
  %v1429 = vpack.c.b16 %v1217, %v1216
  %v1430 = vpack.c.b16 %v1219, %v1218
  %v1431 = vpack.c.b16 %v1221, %v1220
  %v1432 = vpack.c.b16 %v1223, %v1222
  %v1433 = vpack.c.b16 %v1225, %v1224
  %v1434 = vpack.c.b16 %v1227, %v1226
  %v1435 = vpack.c.b16 %v1229, %v1228
  %v1436 = vpack.c.b16 %v1231, %v1230
  %v1437 = vpack.c.b16 %v1233, %v1232
  %v1438 = vpack.c.b16 %v1235, %v1234
  %v1439 = vpack.c.b16 %v1237, %v1236
  %v1440 = vpack.c.b16 %v1239, %v1238
  %v1441 = vpack.c.b16 %v1241, %v1240
  %v1442 = vpack.c.b16 %v1243, %v1242
  %v1443 = vpack.c.b16 %v1245, %v1244
  %v1444 = vpack.c.b16 %v1247, %v1246
  %v1445 = vpack.c.b16 %v1249, %v1248
  %v1446 = vpack.c.b16 %v1251, %v1250
  %v1447 = vpack.c.b16 %v1253, %v1252
  %v1448 = vpack.c.b16 %v1255, %v1254
  %v1449 = vpack.c.b16 %v1257, %v1256
  %1642 = vmatprep.subr.bf16.mxu0 0
  %1643 = vmatpush1.bf16.msra.mxu0 %v1258
  %1644 = vmatprep.subr.bf16.mxu0 0
  %1645 = vmatpush1.bf16.msra.mxu0 %v1259
  %1646 = vmatprep.subr.bf16.mxu0 0
  %1647 = vmatpush1.bf16.msra.mxu0 %v1260
  %1648 = vmatprep.subr.bf16.mxu0 0
  %1649 = vmatpush1.bf16.msra.mxu0 %v1261
  %1650 = vmatprep.subr.bf16.mxu0 0
  %1651 = vmatpush1.bf16.msra.mxu0 %v1262
  %1652 = vmatprep.subr.bf16.mxu0 0
  %1653 = vmatpush1.bf16.msra.mxu0 %v1263
  %1654 = vmatprep.subr.bf16.mxu0 0
  %1655 = vmatpush1.bf16.msra.mxu0 %v1264
  %1656 = vmatprep.subr.bf16.mxu0 0
  %1657 = vmatpush1.bf16.msra.mxu0 %v1265
  %1658 = vmatprep.subr.bf16.mxu0 0
  %1659 = vmatpush1.bf16.msra.mxu0 %v1266
  %1660 = vmatprep.subr.bf16.mxu0 0
  %1661 = vmatpush1.bf16.msra.mxu0 %v1267
  %1662 = vmatprep.subr.bf16.mxu0 0
  %1663 = vmatpush1.bf16.msra.mxu0 %v1268
  %1664 = vmatprep.subr.bf16.mxu0 0
  %1665 = vmatpush1.bf16.msra.mxu0 %v1269
  %1666 = vmatprep.subr.bf16.mxu0 0
  %1667 = vmatpush1.bf16.msra.mxu0 %v1270
  %1668 = vmatprep.subr.bf16.mxu0 0
  %1669 = vmatpush1.bf16.msra.mxu0 %v1271
  %1670 = vmatprep.subr.bf16.mxu0 0
  %1671 = vmatpush1.bf16.msra.mxu0 %v1272
  %1672 = vmatprep.subr.bf16.mxu0 0
  %1673 = vmatpush1.bf16.msra.mxu0 %v1273
  %1674 = vmatprep.mubr.bf16.mxu0 %v76
  %1675 = vmatmul.mubr.bf16.gmra.mrb[0].mxu0 %v75
  %v1676 = vpop.f32.mrb[0].mxu0
  %v1677 = vadd.f32 %v488, %v1676
  %v1678 = vpop.f32.mrb[0].mxu0
  %v1679 = vpop.f32.mrb[0].mxu0
  %v1680 = vadd.f32 %v488, %v1679
  %v1681 = vpop.f32.mrb[0].mxu0
  %1682 = vdwg.mxu0
  %1683 = vmatprep.subr.bf16.mxu0 0
  %1684 = vmatpush1.bf16.msra.mxu0 %v1274
  %1685 = vmatprep.subr.bf16.mxu0 0
  %1686 = vmatpush1.bf16.msra.mxu0 %v1275
  %1687 = vmatprep.subr.bf16.mxu0 0
  %1688 = vmatpush1.bf16.msra.mxu0 %v1276
  %1689 = vmatprep.subr.bf16.mxu0 0
  %1690 = vmatpush1.bf16.msra.mxu0 %v1277
  %1691 = vmatprep.subr.bf16.mxu0 0
  %1692 = vmatpush1.bf16.msra.mxu0 %v1278
  %1693 = vmatprep.subr.bf16.mxu0 0
  %1694 = vmatpush1.bf16.msra.mxu0 %v1279
  %1695 = vmatprep.subr.bf16.mxu0 0
  %1696 = vmatpush1.bf16.msra.mxu0 %v1280
  %1697 = vmatprep.subr.bf16.mxu0 0
  %1698 = vmatpush1.bf16.msra.mxu0 %v1281
  %1699 = vmatprep.subr.bf16.mxu0 0
  %1700 = vmatpush1.bf16.msra.mxu0 %v1282
  %1701 = vmatprep.subr.bf16.mxu0 0
  %1702 = vmatpush1.bf16.msra.mxu0 %v1283
  %1703 = vmatprep.subr.bf16.mxu0 0
  %1704 = vmatpush1.bf16.msra.mxu0 %v1284
  %1705 = vmatprep.subr.bf16.mxu0 0
  %1706 = vmatpush1.bf16.msra.mxu0 %v1285
  %1707 = vmatprep.subr.bf16.mxu0 0
  %1708 = vmatpush1.bf16.msra.mxu0 %v1286
  %1709 = vmatprep.subr.bf16.mxu0 0
  %1710 = vmatpush1.bf16.msra.mxu0 %v1287
  %1711 = vmatprep.subr.bf16.mxu0 0
  %1712 = vmatpush1.bf16.msra.mxu0 %v1288
  %1713 = vmatprep.subr.bf16.mxu0 0
  %1714 = vmatpush1.bf16.msra.mxu0 %v1289
  %1715 = vmatprep.mubr.bf16.mxu0 %v78
  %1716 = vmatmul.mubr.bf16.gmra.mrb[0].mxu0 %v77
  %v1717 = vpop.f32.mrb[0].mxu0
  %v1718 = vadd.f32 %v1677, %v1717
  %v1719 = vpop.f32.mrb[0].mxu0
  %v1720 = vpop.f32.mrb[0].mxu0
  %v1721 = vadd.f32 %v1680, %v1720
  %v1722 = vpop.f32.mrb[0].mxu0
  %1723 = vdwg.mxu0
  %1724 = vmatprep.subr.bf16.mxu0 0
  %1725 = vmatpush1.bf16.msra.mxu0 %v1290
  %1726 = vmatprep.subr.bf16.mxu0 0
  %1727 = vmatpush1.bf16.msra.mxu0 %v1291
  %1728 = vmatprep.subr.bf16.mxu0 0
  %1729 = vmatpush1.bf16.msra.mxu0 %v1292
  %1730 = vmatprep.subr.bf16.mxu0 0
  %1731 = vmatpush1.bf16.msra.mxu0 %v1293
  %1732 = vmatprep.subr.bf16.mxu0 0
  %1733 = vmatpush1.bf16.msra.mxu0 %v1294
  %1734 = vmatprep.subr.bf16.mxu0 0
  %1735 = vmatpush1.bf16.msra.mxu0 %v1295
  %1736 = vmatprep.subr.bf16.mxu0 0
  %1737 = vmatpush1.bf16.msra.mxu0 %v1296
  %1738 = vmatprep.subr.bf16.mxu0 0
  %1739 = vmatpush1.bf16.msra.mxu0 %v1297
  %1740 = vmatprep.subr.bf16.mxu0 0
  %1741 = vmatpush1.bf16.msra.mxu0 %v1298
  %1742 = vmatprep.subr.bf16.mxu0 0
  %1743 = vmatpush1.bf16.msra.mxu0 %v1299
  %1744 = vmatprep.subr.bf16.mxu0 0
  %1745 = vmatpush1.bf16.msra.mxu0 %v1300
  %1746 = vmatprep.subr.bf16.mxu0 0
  %1747 = vmatpush1.bf16.msra.mxu0 %v1301
  %1748 = vmatprep.subr.bf16.mxu0 0
  %1749 = vmatpush1.bf16.msra.mxu0 %v1302
  %1750 = vmatprep.subr.bf16.mxu0 0
  %1751 = vmatpush1.bf16.msra.mxu0 %v1303
  %1752 = vmatprep.subr.bf16.mxu0 0
  %1753 = vmatpush1.bf16.msra.mxu0 %v1304
  %1754 = vmatprep.subr.bf16.mxu0 0
  %1755 = vmatpush1.bf16.msra.mxu0 %v1305
  %1756 = vmatprep.mubr.bf16.mxu0 %v80
  %1757 = vmatmul.mubr.bf16.gmra.mrb[0].mxu0 %v79
  %v1758 = vpop.f32.mrb[0].mxu0
  %v1759 = vadd.f32 %v1718, %v1758
  %v1760 = vpop.f32.mrb[0].mxu0
  %v1761 = vpop.f32.mrb[0].mxu0
  %v1762 = vadd.f32 %v1721, %v1761
  %v1763 = vpop.f32.mrb[0].mxu0
  %1764 = vdwg.mxu0
  %1765 = vmatprep.subr.bf16.mxu0 0
  %1766 = vmatpush1.bf16.msra.mxu0 %v1306
  %1767 = vmatprep.subr.bf16.mxu0 0
  %1768 = vmatpush1.bf16.msra.mxu0 %v1307
  %1769 = vmatprep.subr.bf16.mxu0 0
  %1770 = vmatpush1.bf16.msra.mxu0 %v1308
  %1771 = vmatprep.subr.bf16.mxu0 0
  %1772 = vmatpush1.bf16.msra.mxu0 %v1309
  %1773 = vmatprep.subr.bf16.mxu0 0
  %1774 = vmatpush1.bf16.msra.mxu0 %v1310
  %1775 = vmatprep.subr.bf16.mxu0 0
  %1776 = vmatpush1.bf16.msra.mxu0 %v1311
  %1777 = vmatprep.subr.bf16.mxu0 0
  %1778 = vmatpush1.bf16.msra.mxu0 %v1312
  %1779 = vmatprep.subr.bf16.mxu0 0
  %1780 = vmatpush1.bf16.msra.mxu0 %v1313
  %1781 = vmatprep.subr.bf16.mxu0 0
  %1782 = vmatpush1.bf16.msra.mxu0 %v1314
  %1783 = vmatprep.subr.bf16.mxu0 0
  %1784 = vmatpush1.bf16.msra.mxu0 %v1315
  %1785 = vmatprep.subr.bf16.mxu0 0
  %1786 = vmatpush1.bf16.msra.mxu0 %v1316
  %1787 = vmatprep.subr.bf16.mxu0 0
  %1788 = vmatpush1.bf16.msra.mxu0 %v1317
  %1789 = vmatprep.subr.bf16.mxu0 0
  %1790 = vmatpush1.bf16.msra.mxu0 %v1318
  %1791 = vmatprep.subr.bf16.mxu0 0
  %1792 = vmatpush1.bf16.msra.mxu0 %v1319
  %1793 = vmatprep.subr.bf16.mxu0 0
  %1794 = vmatpush1.bf16.msra.mxu0 %v1320
  %1795 = vmatprep.subr.bf16.mxu0 0
  %1796 = vmatpush1.bf16.msra.mxu0 %v1321
  %1797 = vmatprep.mubr.bf16.mxu0 %v82
  %1798 = vmatmul.mubr.bf16.gmra.mrb[0].mxu0 %v81
  %v1799 = vpop.f32.mrb[0].mxu0
  %v1800 = vadd.f32 %v1759, %v1799
  %v1801 = vpop.f32.mrb[0].mxu0
  %v1802 = vpop.f32.mrb[0].mxu0
  %v1803 = vadd.f32 %v1762, %v1802
  %v1804 = vpop.f32.mrb[0].mxu0
  %1805 = vdwg.mxu0
  %1806 = vmatprep.subr.bf16.mxu0 0
  %1807 = vmatpush1.bf16.msra.mxu0 %v1322
  %1808 = vmatprep.subr.bf16.mxu0 0
  %1809 = vmatpush1.bf16.msra.mxu0 %v1323
  %1810 = vmatprep.subr.bf16.mxu0 0
  %1811 = vmatpush1.bf16.msra.mxu0 %v1324
  %1812 = vmatprep.subr.bf16.mxu0 0
  %1813 = vmatpush1.bf16.msra.mxu0 %v1325
  %1814 = vmatprep.subr.bf16.mxu0 0
  %1815 = vmatpush1.bf16.msra.mxu0 %v1326
  %1816 = vmatprep.subr.bf16.mxu0 0
  %1817 = vmatpush1.bf16.msra.mxu0 %v1327
  %1818 = vmatprep.subr.bf16.mxu0 0
  %1819 = vmatpush1.bf16.msra.mxu0 %v1328
  %1820 = vmatprep.subr.bf16.mxu0 0
  %1821 = vmatpush1.bf16.msra.mxu0 %v1329
  %1822 = vmatprep.subr.bf16.mxu0 0
  %1823 = vmatpush1.bf16.msra.mxu0 %v1330
  %1824 = vmatprep.subr.bf16.mxu0 0
  %1825 = vmatpush1.bf16.msra.mxu0 %v1331
  %1826 = vmatprep.subr.bf16.mxu0 0
  %1827 = vmatpush1.bf16.msra.mxu0 %v1332
  %1828 = vmatprep.subr.bf16.mxu0 0
  %1829 = vmatpush1.bf16.msra.mxu0 %v1333
  %1830 = vmatprep.subr.bf16.mxu0 0
  %1831 = vmatpush1.bf16.msra.mxu0 %v1334
  %1832 = vmatprep.subr.bf16.mxu0 0
  %1833 = vmatpush1.bf16.msra.mxu0 %v1335
  %1834 = vmatprep.subr.bf16.mxu0 0
  %1835 = vmatpush1.bf16.msra.mxu0 %v1336
  %1836 = vmatprep.subr.bf16.mxu0 0
  %1837 = vmatpush1.bf16.msra.mxu0 %v1337
  %1838 = vmatprep.mubr.bf16.mxu0 %v84
  %1839 = vmatmul.mubr.bf16.gmra.mrb[0].mxu0 %v83
  %v1840 = vpop.f32.mrb[0].mxu0
  %v1841 = vadd.f32 %v1800, %v1840
  %v1842 = vpop.f32.mrb[0].mxu0
  %v1843 = vpop.f32.mrb[0].mxu0
  %v1844 = vadd.f32 %v1803, %v1843
  %v1845 = vpop.f32.mrb[0].mxu0
  %1846 = vdwg.mxu0
  %1847 = vmatprep.subr.bf16.mxu0 0
  %1848 = vmatpush1.bf16.msra.mxu0 %v1338
  %1849 = vmatprep.subr.bf16.mxu0 0
  %1850 = vmatpush1.bf16.msra.mxu0 %v1339
  %1851 = vmatprep.subr.bf16.mxu0 0
  %1852 = vmatpush1.bf16.msra.mxu0 %v1340
  %1853 = vmatprep.subr.bf16.mxu0 0
  %1854 = vmatpush1.bf16.msra.mxu0 %v1341
  %1855 = vmatprep.subr.bf16.mxu0 0
  %1856 = vmatpush1.bf16.msra.mxu0 %v1342
  %1857 = vmatprep.subr.bf16.mxu0 0
  %1858 = vmatpush1.bf16.msra.mxu0 %v1343
  %1859 = vmatprep.subr.bf16.mxu0 0
  %1860 = vmatpush1.bf16.msra.mxu0 %v1344
  %1861 = vmatprep.subr.bf16.mxu0 0
  %1862 = vmatpush1.bf16.msra.mxu0 %v1345
  %1863 = vmatprep.subr.bf16.mxu0 0
  %1864 = vmatpush1.bf16.msra.mxu0 %v1346
  %1865 = vmatprep.subr.bf16.mxu0 0
  %1866 = vmatpush1.bf16.msra.mxu0 %v1347
  %1867 = vmatprep.subr.bf16.mxu0 0
  %1868 = vmatpush1.bf16.msra.mxu0 %v1348
  %1869 = vmatprep.subr.bf16.mxu0 0
  %1870 = vmatpush1.bf16.msra.mxu0 %v1349
  %1871 = vmatprep.subr.bf16.mxu0 0
  %1872 = vmatpush1.bf16.msra.mxu0 %v1350
  %1873 = vmatprep.subr.bf16.mxu0 0
  %1874 = vmatpush1.bf16.msra.mxu0 %v1351
  %1875 = vmatprep.subr.bf16.mxu0 0
  %1876 = vmatpush1.bf16.msra.mxu0 %v1352
  %1877 = vmatprep.subr.bf16.mxu0 0
  %1878 = vmatpush1.bf16.msra.mxu0 %v1353
  %1879 = vmatprep.mubr.bf16.mxu0 %v86
  %1880 = vmatmul.mubr.bf16.gmra.mrb[0].mxu0 %v85
  %v1881 = vpop.f32.mrb[0].mxu0
  %v1882 = vadd.f32 %v1841, %v1881
  %v1883 = vpop.f32.mrb[0].mxu0
  %v1884 = vpop.f32.mrb[0].mxu0
  %v1885 = vadd.f32 %v1844, %v1884
  %v1886 = vpop.f32.mrb[0].mxu0
  %1887 = vdwg.mxu0
  %1888 = vmatprep.subr.bf16.mxu0 0
  %1889 = vmatpush1.bf16.msra.mxu0 %v1354
  %1890 = vmatprep.subr.bf16.mxu0 0
  %1891 = vmatpush1.bf16.msra.mxu0 %v1355
  %1892 = vmatprep.subr.bf16.mxu0 0
  %1893 = vmatpush1.bf16.msra.mxu0 %v1356
  %1894 = vmatprep.subr.bf16.mxu0 0
  %1895 = vmatpush1.bf16.msra.mxu0 %v1357
  %1896 = vmatprep.subr.bf16.mxu0 0
  %1897 = vmatpush1.bf16.msra.mxu0 %v1358
  %1898 = vmatprep.subr.bf16.mxu0 0
  %1899 = vmatpush1.bf16.msra.mxu0 %v1359
  %1900 = vmatprep.subr.bf16.mxu0 0
  %1901 = vmatpush1.bf16.msra.mxu0 %v1360
  %1902 = vmatprep.subr.bf16.mxu0 0
  %1903 = vmatpush1.bf16.msra.mxu0 %v1361
  %1904 = vmatprep.subr.bf16.mxu0 0
  %1905 = vmatpush1.bf16.msra.mxu0 %v1362
  %1906 = vmatprep.subr.bf16.mxu0 0
  %1907 = vmatpush1.bf16.msra.mxu0 %v1363
  %1908 = vmatprep.subr.bf16.mxu0 0
  %1909 = vmatpush1.bf16.msra.mxu0 %v1364
  %1910 = vmatprep.subr.bf16.mxu0 0
  %1911 = vmatpush1.bf16.msra.mxu0 %v1365
  %1912 = vmatprep.subr.bf16.mxu0 0
  %1913 = vmatpush1.bf16.msra.mxu0 %v1366
  %1914 = vmatprep.subr.bf16.mxu0 0
  %1915 = vmatpush1.bf16.msra.mxu0 %v1367
  %1916 = vmatprep.subr.bf16.mxu0 0
  %1917 = vmatpush1.bf16.msra.mxu0 %v1368
  %1918 = vmatprep.subr.bf16.mxu0 0
  %1919 = vmatpush1.bf16.msra.mxu0 %v1369
  %1920 = vmatprep.mubr.bf16.mxu0 %v88
  %1921 = vmatmul.mubr.bf16.gmra.mrb[0].mxu0 %v87
  %v1922 = vpop.f32.mrb[0].mxu0
  %v1923 = vadd.f32 %v1882, %v1922
  %v1924 = vpop.f32.mrb[0].mxu0
  %v1925 = vpop.f32.mrb[0].mxu0
  %v1926 = vadd.f32 %v1885, %v1925
  %v1927 = vpop.f32.mrb[0].mxu0
  %1928 = vdwg.mxu0
  %1929 = vmatprep.subr.bf16.mxu0 0
  %1930 = vmatpush1.bf16.msra.mxu0 %v1370
  %1931 = vmatprep.subr.bf16.mxu0 0
  %1932 = vmatpush1.bf16.msra.mxu0 %v1371
  %1933 = vmatprep.subr.bf16.mxu0 0
  %1934 = vmatpush1.bf16.msra.mxu0 %v1372
  %1935 = vmatprep.subr.bf16.mxu0 0
  %1936 = vmatpush1.bf16.msra.mxu0 %v1373
  %1937 = vmatprep.subr.bf16.mxu0 0
  %1938 = vmatpush1.bf16.msra.mxu0 %v1374
  %1939 = vmatprep.subr.bf16.mxu0 0
  %1940 = vmatpush1.bf16.msra.mxu0 %v1375
  %1941 = vmatprep.subr.bf16.mxu0 0
  %1942 = vmatpush1.bf16.msra.mxu0 %v1376
  %1943 = vmatprep.subr.bf16.mxu0 0
  %1944 = vmatpush1.bf16.msra.mxu0 %v1377
  %1945 = vmatprep.subr.bf16.mxu0 0
  %1946 = vmatpush1.bf16.msra.mxu0 %v1378
  %1947 = vmatprep.subr.bf16.mxu0 0
  %1948 = vmatpush1.bf16.msra.mxu0 %v1379
  %1949 = vmatprep.subr.bf16.mxu0 0
  %1950 = vmatpush1.bf16.msra.mxu0 %v1380
  %1951 = vmatprep.subr.bf16.mxu0 0
  %1952 = vmatpush1.bf16.msra.mxu0 %v1381
  %1953 = vmatprep.subr.bf16.mxu0 0
  %1954 = vmatpush1.bf16.msra.mxu0 %v1382
  %1955 = vmatprep.subr.bf16.mxu0 0
  %1956 = vmatpush1.bf16.msra.mxu0 %v1383
  %1957 = vmatprep.subr.bf16.mxu0 0
  %1958 = vmatpush1.bf16.msra.mxu0 %v1384
  %1959 = vmatprep.subr.bf16.mxu0 0
  %1960 = vmatpush1.bf16.msra.mxu0 %v1385
  %1961 = vmatprep.mubr.bf16.mxu0 %v90
  %1962 = vmatmul.mubr.bf16.gmra.mrb[0].mxu0 %v89
  %v1963 = vpop.f32.mrb[0].mxu0
  %v1964 = vadd.f32 %v1923, %v1963
  %v1965 = vpop.f32.mrb[0].mxu0
  %v1966 = vpop.f32.mrb[0].mxu0
  %v1967 = vadd.f32 %v1926, %v1966
  %v1968 = vpop.f32.mrb[0].mxu0
  %1969 = vdwg.mxu0
  %1970 = vmatprep.subr.bf16.mxu0 0
  %1971 = vmatpush1.bf16.msra.mxu0 %v1386
  %1972 = vmatprep.subr.bf16.mxu0 0
  %1973 = vmatpush1.bf16.msra.mxu0 %v1387
  %1974 = vmatprep.subr.bf16.mxu0 0
  %1975 = vmatpush1.bf16.msra.mxu0 %v1388
  %1976 = vmatprep.subr.bf16.mxu0 0
  %1977 = vmatpush1.bf16.msra.mxu0 %v1389
  %1978 = vmatprep.subr.bf16.mxu0 0
  %1979 = vmatpush1.bf16.msra.mxu0 %v1390
  %1980 = vmatprep.subr.bf16.mxu0 0
  %1981 = vmatpush1.bf16.msra.mxu0 %v1391
  %1982 = vmatprep.subr.bf16.mxu0 0
  %1983 = vmatpush1.bf16.msra.mxu0 %v1392
  %1984 = vmatprep.subr.bf16.mxu0 0
  %1985 = vmatpush1.bf16.msra.mxu0 %v1393
  %1986 = vmatprep.subr.bf16.mxu0 0
  %1987 = vmatpush1.bf16.msra.mxu0 %v1394
  %1988 = vmatprep.subr.bf16.mxu0 0
  %1989 = vmatpush1.bf16.msra.mxu0 %v1395
  %1990 = vmatprep.subr.bf16.mxu0 0
  %1991 = vmatpush1.bf16.msra.mxu0 %v1396
  %1992 = vmatprep.subr.bf16.mxu0 0
  %1993 = vmatpush1.bf16.msra.mxu0 %v1397
  %1994 = vmatprep.subr.bf16.mxu0 0
  %1995 = vmatpush1.bf16.msra.mxu0 %v1398
  %1996 = vmatprep.subr.bf16.mxu0 0
  %1997 = vmatpush1.bf16.msra.mxu0 %v1399
  %1998 = vmatprep.subr.bf16.mxu0 0
  %1999 = vmatpush1.bf16.msra.mxu0 %v1400
  %2000 = vmatprep.subr.bf16.mxu0 0
  %2001 = vmatpush1.bf16.msra.mxu0 %v1401
  %2002 = vmatprep.mubr.bf16.mxu0 %v92
  %2003 = vmatmul.mubr.bf16.gmra.mrb[0].mxu0 %v91
  %v2004 = vpop.f32.mrb[0].mxu0
  %v2005 = vadd.f32 %v1964, %v2004
  %v2006 = vpop.f32.mrb[0].mxu0
  %v2007 = vpop.f32.mrb[0].mxu0
  %v2008 = vadd.f32 %v1967, %v2007
  %v2009 = vpop.f32.mrb[0].mxu0
  %2010 = vdwg.mxu0
  %2011 = vmatprep.subr.bf16.mxu0 0
  %2012 = vmatpush1.bf16.msra.mxu0 %v1402
  %2013 = vmatprep.subr.bf16.mxu0 0
  %2014 = vmatpush1.bf16.msra.mxu0 %v1403
  %2015 = vmatprep.subr.bf16.mxu0 0
  %2016 = vmatpush1.bf16.msra.mxu0 %v1404
  %2017 = vmatprep.subr.bf16.mxu0 0
  %2018 = vmatpush1.bf16.msra.mxu0 %v1405
  %2019 = vmatprep.subr.bf16.mxu0 0
  %2020 = vmatpush1.bf16.msra.mxu0 %v1406
  %2021 = vmatprep.subr.bf16.mxu0 0
  %2022 = vmatpush1.bf16.msra.mxu0 %v1407
  %2023 = vmatprep.subr.bf16.mxu0 0
  %2024 = vmatpush1.bf16.msra.mxu0 %v1408
  %2025 = vmatprep.subr.bf16.mxu0 0
  %2026 = vmatpush1.bf16.msra.mxu0 %v1409
  %2027 = vmatprep.subr.bf16.mxu0 0
  %2028 = vmatpush1.bf16.msra.mxu0 %v1410
  %2029 = vmatprep.subr.bf16.mxu0 0
  %2030 = vmatpush1.bf16.msra.mxu0 %v1411
  %2031 = vmatprep.subr.bf16.mxu0 0
  %2032 = vmatpush1.bf16.msra.mxu0 %v1412
  %2033 = vmatprep.subr.bf16.mxu0 0
  %2034 = vmatpush1.bf16.msra.mxu0 %v1413
  %2035 = vmatprep.subr.bf16.mxu0 0
  %2036 = vmatpush1.bf16.msra.mxu0 %v1414
  %2037 = vmatprep.subr.bf16.mxu0 0
  %2038 = vmatpush1.bf16.msra.mxu0 %v1415
  %2039 = vmatprep.subr.bf16.mxu0 0
  %2040 = vmatpush1.bf16.msra.mxu0 %v1416
  %2041 = vmatprep.subr.bf16.mxu0 0
  %2042 = vmatpush1.bf16.msra.mxu0 %v1417
  %2043 = vmatprep.mubr.bf16.mxu0 %v94
  %2044 = vmatmul.mubr.bf16.gmra.mrb[0].mxu0 %v93
  %v2045 = vpop.f32.mrb[0].mxu0
  %v2046 = vadd.f32 %v2005, %v2045
  %v2047 = vpop.f32.mrb[0].mxu0
  %v2048 = vpop.f32.mrb[0].mxu0
  %v2049 = vadd.f32 %v2008, %v2048
  %v2050 = vpop.f32.mrb[0].mxu0
  %2051 = vdwg.mxu0
  %2052 = vmatprep.subr.bf16.mxu0 0
  %2053 = vmatpush1.bf16.msra.mxu0 %v1418
  %2054 = vmatprep.subr.bf16.mxu0 0
  %2055 = vmatpush1.bf16.msra.mxu0 %v1419
  %2056 = vmatprep.subr.bf16.mxu0 0
  %2057 = vmatpush1.bf16.msra.mxu0 %v1420
  %2058 = vmatprep.subr.bf16.mxu0 0
  %2059 = vmatpush1.bf16.msra.mxu0 %v1421
  %2060 = vmatprep.subr.bf16.mxu0 0
  %2061 = vmatpush1.bf16.msra.mxu0 %v1422
  %2062 = vmatprep.subr.bf16.mxu0 0
  %2063 = vmatpush1.bf16.msra.mxu0 %v1423
  %2064 = vmatprep.subr.bf16.mxu0 0
  %2065 = vmatpush1.bf16.msra.mxu0 %v1424
  %2066 = vmatprep.subr.bf16.mxu0 0
  %2067 = vmatpush1.bf16.msra.mxu0 %v1425
  %2068 = vmatprep.subr.bf16.mxu0 0
  %2069 = vmatpush1.bf16.msra.mxu0 %v1426
  %2070 = vmatprep.subr.bf16.mxu0 0
  %2071 = vmatpush1.bf16.msra.mxu0 %v1427
  %2072 = vmatprep.subr.bf16.mxu0 0
  %2073 = vmatpush1.bf16.msra.mxu0 %v1428
  %2074 = vmatprep.subr.bf16.mxu0 0
  %2075 = vmatpush1.bf16.msra.mxu0 %v1429
  %2076 = vmatprep.subr.bf16.mxu0 0
  %2077 = vmatpush1.bf16.msra.mxu0 %v1430
  %2078 = vmatprep.subr.bf16.mxu0 0
  %2079 = vmatpush1.bf16.msra.mxu0 %v1431
  %2080 = vmatprep.subr.bf16.mxu0 0
  %2081 = vmatpush1.bf16.msra.mxu0 %v1432
  %2082 = vmatprep.subr.bf16.mxu0 0
  %2083 = vmatpush1.bf16.msra.mxu0 %v1433
  %2084 = vmatprep.mubr.bf16.mxu0 %v96
  %2085 = vmatmul.mubr.bf16.gmra.mrb[0].mxu0 %v95
  %v2086 = vpop.f32.mrb[0].mxu0
  %v2087 = vadd.f32 %v2046, %v2086
  %v2088 = vpop.f32.mrb[0].mxu0
  %v2089 = vpop.f32.mrb[0].mxu0
  %v2090 = vadd.f32 %v2049, %v2089
  %v2091 = vpop.f32.mrb[0].mxu0
  %2092 = vdwg.mxu0
  %2093 = vmatprep.subr.bf16.mxu0 0
  %2094 = vmatpush1.bf16.msra.mxu0 %v1434
  %2095 = vmatprep.subr.bf16.mxu0 0
  %2096 = vmatpush1.bf16.msra.mxu0 %v1435
  %2097 = vmatprep.subr.bf16.mxu0 0
  %2098 = vmatpush1.bf16.msra.mxu0 %v1436
  %2099 = vmatprep.subr.bf16.mxu0 0
  %2100 = vmatpush1.bf16.msra.mxu0 %v1437
  %2101 = vmatprep.subr.bf16.mxu0 0
  %2102 = vmatpush1.bf16.msra.mxu0 %v1438
  %2103 = vmatprep.subr.bf16.mxu0 0
  %2104 = vmatpush1.bf16.msra.mxu0 %v1439
  %2105 = vmatprep.subr.bf16.mxu0 0
  %2106 = vmatpush1.bf16.msra.mxu0 %v1440
  %2107 = vmatprep.subr.bf16.mxu0 0
  %2108 = vmatpush1.bf16.msra.mxu0 %v1441
  %2109 = vmatprep.subr.bf16.mxu0 0
  %2110 = vmatpush1.bf16.msra.mxu0 %v1442
  %2111 = vmatprep.subr.bf16.mxu0 0
  %2112 = vmatpush1.bf16.msra.mxu0 %v1443
  %2113 = vmatprep.subr.bf16.mxu0 0
  %2114 = vmatpush1.bf16.msra.mxu0 %v1444
  %2115 = vmatprep.subr.bf16.mxu0 0
  %2116 = vmatpush1.bf16.msra.mxu0 %v1445
  %2117 = vmatprep.subr.bf16.mxu0 0
  %2118 = vmatpush1.bf16.msra.mxu0 %v1446
  %2119 = vmatprep.subr.bf16.mxu0 0
  %2120 = vmatpush1.bf16.msra.mxu0 %v1447
  %2121 = vmatprep.subr.bf16.mxu0 0
  %2122 = vmatpush1.bf16.msra.mxu0 %v1448
  %2123 = vmatprep.subr.bf16.mxu0 0
  %2124 = vmatpush1.bf16.msra.mxu0 %v1449
  %2125 = vmatprep.mubr.bf16.mxu0 %v98
  %2126 = vmatmul.mubr.bf16.gmra.mrb[0].mxu0 %v97
  %v2127 = vpop.f32.mrb[0].mxu0
  %v2128 = vadd.f32 %v2087, %v2127
  %v2129 = vpop.f32.mrb[0].mxu0
  %v2130 = vpop.f32.mrb[0].mxu0
  %v2131 = vadd.f32 %v2090, %v2130
  %v2132 = vpop.f32.mrb[0].mxu0
  %2133 = vdwg.mxu0
  %v2134 = vmax.f32 %v2128, 0.0
  %v2135 = vmax.f32 %v2131, 0.0
  %v2136 = vpack.c.bf16 %v2135, %v2134
  %v2137 = vld [vmem:[%s3] sm:$0xf]
  %v2138 = vld [vmem:[%s3 + $0x4] sm:$0xf]
  %v2139 = vld [vmem:[%s3 + $0x8] sm:$0xf]
  %v2140 = vld [vmem:[%s3 + $0xc] sm:$0xf]
  %v2141 = vld [vmem:[%s3 + $0x10] sm:$0xf]
  %v2142 = vld [vmem:[%s3 + $0x14] sm:$0xf]
  %v2143 = vld [vmem:[%s3 + $0x18] sm:$0xf]
  %v2144 = vld [vmem:[%s3 + $0x1c] sm:$0xf]
  %v2145 = vld [vmem:[%s3 + $0x20] sm:$0xf]
  %v2146 = vld [vmem:[%s3 + $0x24] sm:$0xf]
  %v2147 = vld [vmem:[%s3 + $0x28] sm:$0xf]
  %v2148 = vld [vmem:[%s3 + $0x2c] sm:$0xf]
  %v2149 = vld [vmem:[%s3 + $0x30] sm:$0xf]
  %v2150 = vld [vmem:[%s3 + $0x34] sm:$0xf]
  %v2151 = vld [vmem:[%s3 + $0x38] sm:$0xf]
  %v2152 = vld [vmem:[%s3 + $0x3c] sm:$0xf]
  %v2153 = vld [vmem:[%s4] sm:$0x1]
  %v2155 = vlaneseq
  %v2156 = vshrl.u32 %v2155, 7
  %v2157 = vsub.s32 0, %v2156
  %v2158 = vrot.slane %v2153, %v2157
  %v2176 = vunpack.c.l.b16 %v2137
  %v2177 = vunpack.c.l.b16 %v2138
  %v2178 = vunpack.c.l.b16 %v2139
  %v2179 = vunpack.c.l.b16 %v2140
  %v2180 = vunpack.c.l.b16 %v2141
  %v2181 = vunpack.c.l.b16 %v2142
  %v2182 = vunpack.c.l.b16 %v2143
  %v2183 = vunpack.c.l.b16 %v2144
  %v2184 = vunpack.c.l.b16 %v2145
  %v2185 = vunpack.c.l.b16 %v2146
  %v2186 = vunpack.c.l.b16 %v2147
  %v2187 = vunpack.c.l.b16 %v2148
  %v2188 = vunpack.c.l.b16 %v2149
  %v2189 = vunpack.c.l.b16 %v2150
  %v2190 = vunpack.c.l.b16 %v2151
  %v2191 = vunpack.c.l.b16 %v2152
  %v2192 = vpack.c.b16 %v2177, %v2176
  %v2193 = vpack.c.b16 %v2179, %v2178
  %v2194 = vpack.c.b16 %v2181, %v2180
  %v2195 = vpack.c.b16 %v2183, %v2182
  %v2196 = vpack.c.b16 %v2185, %v2184
  %v2197 = vpack.c.b16 %v2187, %v2186
  %v2198 = vpack.c.b16 %v2189, %v2188
  %v2199 = vpack.c.b16 %v2191, %v2190
  %2208 = vmatprep.subr.bf16.mxu0 0
  %2209 = vmatpush1.bf16.msra.mxu0 %v2192
  %2210 = vmatprep.subr.bf16.mxu0 0
  %2211 = vmatpush1.bf16.msra.mxu0 %v2193
  %2212 = vmatprep.subr.bf16.mxu0 0
  %2213 = vmatpush1.bf16.msra.mxu0 %v2194
  %2214 = vmatprep.subr.bf16.mxu0 0
  %2215 = vmatpush1.bf16.msra.mxu0 %v2195
  %2216 = vmatprep.subr.bf16.mxu0 0
  %2217 = vmatpush1.bf16.msra.mxu0 %v2196
  %2218 = vmatprep.subr.bf16.mxu0 0
  %2219 = vmatpush1.bf16.msra.mxu0 %v2197
  %2220 = vmatprep.subr.bf16.mxu0 0
  %2221 = vmatpush1.bf16.msra.mxu0 %v2198
  %2222 = vmatprep.subr.bf16.mxu0 0
  %2223 = vmatpush1.bf16.msra.mxu0 %v2199
  %2224 = vmatprep.subr.bf16.mxu0 0
  %2225 = vmatpush1.bf16.msra.mxu0 0
  %2226 = vmatprep.subr.bf16.mxu0 0
  %2227 = vmatpush1.bf16.msra.mxu0 0
  %2228 = vmatprep.subr.bf16.mxu0 0
  %2229 = vmatpush1.bf16.msra.mxu0 0
  %2230 = vmatprep.subr.bf16.mxu0 0
  %2231 = vmatpush1.bf16.msra.mxu0 0
  %2232 = vmatprep.subr.bf16.mxu0 0
  %2233 = vmatpush1.bf16.msra.mxu0 0
  %2234 = vmatprep.subr.bf16.mxu0 0
  %2235 = vmatpush1.bf16.msra.mxu0 0
  %2236 = vmatprep.subr.bf16.mxu0 0
  %2237 = vmatpush1.bf16.msra.mxu0 0
  %2238 = vmatprep.subr.bf16.mxu0 0
  %2239 = vmatpush1.bf16.msra.mxu0 0
  %2240 = vmatprep.mubr.bf16.mxu0 0
  %2241 = vmatmul.mubr.bf16.gmra.mrb[0].mxu0 %v2136
  %v2242 = vpop.f32.mrb[0].mxu0
  %v2243 = vadd.f32 %v2158, %v2242
  %v2244 = vpop.f32.mrb[0].mxu0
  %v2245 = vpop.f32.mrb[0].mxu0
  %v2246 = vadd.f32 %v2158, %v2245
  %v2247 = vpop.f32.mrb[0].mxu0
  %2248 = vdwg.mxu0
  %v2249 = vmax.f32 %v2243, 0.0
  %v2250 = vmax.f32 %v2246, 0.0
  %v2251 = vpack.c.bf16 %v2250, %v2249
  %v2252 = vld [vmem:[%s5] sm:$0xf]
  %v2253 = vld [vmem:[%s5 + $0x4] sm:$0xf]
  %v2254 = vld [vmem:[%s5 + $0x8] sm:$0xf]
  %v2255 = vld [vmem:[%s5 + $0xc] sm:$0xf]
  %v2256 = vld [vmem:[%s5 + $0x10] sm:$0xf]
  %v2257 = vld [vmem:[%s5 + $0x14] sm:$0xf]
  %v2258 = vld [vmem:[%s5 + $0x18] sm:$0xf]
  %v2259 = vld [vmem:[%s5 + $0x1c] sm:$0xf]
  %v2260 = vld [vmem:[%s5 + $0x20] sm:$0xf]
  %v2261 = vld [vmem:[%s5 + $0x24] sm:$0xf]
  %v2262 = vld [vmem:[%s5 + $0x28] sm:$0xf]
  %v2263 = vld [vmem:[%s5 + $0x2c] sm:$0xf]
  %v2264 = vld [vmem:[%s5 + $0x30] sm:$0xf]
  %v2265 = vld [vmem:[%s5 + $0x34] sm:$0xf]
  %v2266 = vld [vmem:[%s5 + $0x38] sm:$0xf]
  %v2267 = vld [vmem:[%s5 + $0x3c] sm:$0xf]
  %v2268 = vld [vmem:[%s6] sm:$0x1]
  %v2270 = vlaneseq
  %v2271 = vshrl.u32 %v2270, 7
  %v2272 = vsub.s32 0, %v2271
  %v2273 = vrot.slane %v2268, %v2272
  %v2291 = vunpack.c.l.b16 %v2252
  %v2292 = vunpack.c.l.b16 %v2253
  %v2293 = vunpack.c.l.b16 %v2254
  %v2294 = vunpack.c.l.b16 %v2255
  %v2295 = vunpack.c.l.b16 %v2256
  %v2296 = vunpack.c.l.b16 %v2257
  %v2297 = vunpack.c.l.b16 %v2258
  %v2298 = vunpack.c.l.b16 %v2259
  %v2299 = vunpack.c.l.b16 %v2260
  %v2300 = vunpack.c.l.b16 %v2261
  %v2301 = vunpack.c.l.b16 %v2262
  %v2302 = vunpack.c.l.b16 %v2263
  %v2303 = vunpack.c.l.b16 %v2264
  %v2304 = vunpack.c.l.b16 %v2265
  %v2305 = vunpack.c.l.b16 %v2266
  %v2306 = vunpack.c.l.b16 %v2267
  %v2307 = vpack.c.b16 %v2292, %v2291
  %v2308 = vpack.c.b16 %v2294, %v2293
  %v2309 = vpack.c.b16 %v2296, %v2295
  %v2310 = vpack.c.b16 %v2298, %v2297
  %v2311 = vpack.c.b16 %v2300, %v2299
  %v2312 = vpack.c.b16 %v2302, %v2301
  %v2313 = vpack.c.b16 %v2304, %v2303
  %v2314 = vpack.c.b16 %v2306, %v2305
  %2323 = vmatprep.subr.bf16.mxu0 0
  %2324 = vmatpush1.bf16.msra.mxu0 %v2307
  %2325 = vmatprep.subr.bf16.mxu0 0
  %2326 = vmatpush1.bf16.msra.mxu0 %v2308
  %2327 = vmatprep.subr.bf16.mxu0 0
  %2328 = vmatpush1.bf16.msra.mxu0 %v2309
  %2329 = vmatprep.subr.bf16.mxu0 0
  %2330 = vmatpush1.bf16.msra.mxu0 %v2310
  %2331 = vmatprep.subr.bf16.mxu0 0
  %2332 = vmatpush1.bf16.msra.mxu0 %v2311
  %2333 = vmatprep.subr.bf16.mxu0 0
  %2334 = vmatpush1.bf16.msra.mxu0 %v2312
  %2335 = vmatprep.subr.bf16.mxu0 0
  %2336 = vmatpush1.bf16.msra.mxu0 %v2313
  %2337 = vmatprep.subr.bf16.mxu0 0
  %2338 = vmatpush1.bf16.msra.mxu0 %v2314
  %2339 = vmatprep.subr.bf16.mxu0 0
  %2340 = vmatpush1.bf16.msra.mxu0 0
  %2341 = vmatprep.subr.bf16.mxu0 0
  %2342 = vmatpush1.bf16.msra.mxu0 0
  %2343 = vmatprep.subr.bf16.mxu0 0
  %2344 = vmatpush1.bf16.msra.mxu0 0
  %2345 = vmatprep.subr.bf16.mxu0 0
  %2346 = vmatpush1.bf16.msra.mxu0 0
  %2347 = vmatprep.subr.bf16.mxu0 0
  %2348 = vmatpush1.bf16.msra.mxu0 0
  %2349 = vmatprep.subr.bf16.mxu0 0
  %2350 = vmatpush1.bf16.msra.mxu0 0
  %2351 = vmatprep.subr.bf16.mxu0 0
  %2352 = vmatpush1.bf16.msra.mxu0 0
  %2353 = vmatprep.subr.bf16.mxu0 0
  %2354 = vmatpush1.bf16.msra.mxu0 0
  %2355 = vmatprep.mubr.bf16.mxu0 0
  %2356 = vmatmul.mubr.bf16.gmra.mrb[0].mxu0 %v2251
  %v2357 = vpop.f32.mrb[0].mxu0
  %v2358 = vadd.f32 %v2273, %v2357
  %v2359 = vpop.f32.mrb[0].mxu0
  %v2360 = vpop.f32.mrb[0].mxu0
  %v2361 = vadd.f32 %v2273, %v2360
  %v2362 = vpop.f32.mrb[0].mxu0
  %2363 = vdwg.mxu0
  %v2364 = vmax.f32 %v2358, 0.0
  %v2365 = vmax.f32 %v2361, 0.0
  %2366 = vst [vmem:[%s7] sm:$0xff] %v2364
  %2367 = vst [vmem:[%s7 + $0x8] sm:$0xff] %v2365
  // Predicated region
  $region30: #{boringnet_forward.1} parent=0 // pred_check
    _
  $region31: #{boringnet_forward.1} parent=0 // pred_check_branch
    %2369 = sbr.rel (0) target = $region33
  $region32: #{boringnet_forward.1} parent=0 // pred_region
    _
  $region33: #{boringnet_forward.1} parent=0 // pred_fallthru
    _
  // Predicated region
  $region34: #{boringnet_forward.1} parent=0 // pred_check
    _
  $region35: #{boringnet_forward.1} parent=0 // pred_check_branch
    %2371 = sbr.rel (0) target = $region37
  $region36: #{boringnet_forward.1} parent=0 // pred_region
    _
  $region37: #{boringnet_forward.1} parent=0 // pred_fallthru
    _

</llo_original>
